<compile_context>
chip_gen: v7x
topology: tpu7x:2x2x1
jax: 0.10.0
libtpu: 0.0.40
codegen_flags: <defaults>
</compile_context>

<pallas_src>
import numpy as np
import jax
import jax.numpy as jnp
from jax import lax
from jax.experimental import pallas as pl
from jax.experimental.pallas import tpu as pltpu

# ---------------------------------------------------------------------------
# Small deterministic configuration (mirrors the torch `configs` object).
# ---------------------------------------------------------------------------
BATCH      = 2
SEQ_LEN    = 16    # configs.seq_len
PRED_LEN   = 8     # configs.pred_len
ENC_IN     = 4     # input variates / channels
EMB_DIM    = 32    # configs.embedding_dim
C_OUT      = 4     # configs.c_out
MOVING_AVG = 5     # configs.moving_avg (decomposition kernel size, odd)
NUM_BLOCKS = 2     # configs.num_blocks
DROPOUT_P  = 0.0   # eval mode -> nn.Dropout is identity

PAD  = (MOVING_AVG - 1) // 2
SEQ  = ENC_IN            # xLSTM sequence length = number of variates
ROWS = SEQ * BATCH       # sequence-major flattened rows (row = c*BATCH + b)
assert MOVING_AVG % 2 == 1, "series decomposition kernel must be odd"


# ---------------------------------------------------------------------------
# In-kernel helpers
# ---------------------------------------------------------------------------
def _layer_norm(x, g, b, eps=1e-5):
    mu = jnp.mean(x, axis=-1, keepdims=True)
    var = jnp.mean(jnp.square(x - mu), axis=-1, keepdims=True)
    return (x - mu) * lax.rsqrt(var + eps) * g + b


def _log_sigmoid(x):
    # log(sigmoid(x)) = min(x, 0) - log(1 + exp(-|x|))
    return jnp.minimum(x, 0.0) - jnp.log(1.0 + jnp.exp(-jnp.abs(x)))


# ---------------------------------------------------------------------------
# Fused kernel: folded decomposition/linears + sLSTM block stack + post-LN/mm2
# ---------------------------------------------------------------------------
def _fused_kernel(x_ref, wtot_ref, bf_ref, lng_ref, lnb_ref, win_ref, wrec_ref,
                  bg_ref, png_ref, pnb_ref, w2_ref, b2_ref, o_ref, hseq_ref):
    E = EMB_DIM
    B = BATCH

    # --- stage 1 (folded): decomposition + Linear_Seasonal/Trend + mm -------
    # Single full-occupancy matmul over all (sequence, batch) rows.
    x = jnp.dot(x_ref[...], wtot_ref[...],
                preferred_element_type=jnp.float32) + bf_ref[...]      # (ROWS, E)

    # --- stage 2: simplified xLSTM block stack -------------------------------
    # TODO(synk): exact xLSTMBlockStack internals (causal conv1d, multi-head
    #             GroupNorm, gated FFN) are not reproduced; simplified to
    #             pre-norm sLSTM residual blocks with exponential gating.
    for blk in range(NUM_BLOCKS):
        xn = _layer_norm(x, lng_ref[blk], lnb_ref[blk])                # (ROWS, E)
        # hoisted input projection: one matmul per block, out of the recurrence
        gates_in = (jnp.dot(xn, win_ref[blk], preferred_element_type=jnp.float32)
                    + bg_ref[blk])                                     # (ROWS, 4E)
        wrec = wrec_ref[blk]                                           # (E, 4E)

        h = jnp.zeros((B, E), jnp.float32)
        c = jnp.zeros((B, E), jnp.float32)
        n = jnp.zeros((B, E), jnp.float32)
        m = jnp.zeros((B, E), jnp.float32)
        for t in range(SEQ):                                           # unrolled (SEQ=4)
            gates = gates_in[t * B:(t + 1) * B] + jnp.dot(
                h, wrec, preferred_element_type=jnp.float32)           # (B, 4E)
            i_pre = gates[:, 0 * E:1 * E]
            f_pre = gates[:, 1 * E:2 * E]
            z_pre = gates[:, 2 * E:3 * E]
            o_pre = gates[:, 3 * E:4 * E]

            log_f = _log_sigmoid(f_pre)
            m_new = jnp.maximum(log_f + m, i_pre)                      # stabilizer
            i_g = jnp.exp(i_pre - m_new)
            f_g = jnp.exp(log_f + m - m_new)
            z = jnp.tanh(z_pre)
            o_g = jax.nn.sigmoid(o_pre)

            c = f_g * c + i_g * z
            n = f_g * n + i_g
            # EUP reciprocal; max(n, 1) floor for stability.
            h = o_g * c * pl.reciprocal(jnp.maximum(n, 1.0), approx=True)
            m = m_new
            hseq_ref[t * B:(t + 1) * B, :] = h
        x = x + hseq_ref[...]                                          # residual

    # add_post_blocks_norm=True, then mm2 (flattened: one matmul, one store)
    xn = _layer_norm(x, png_ref[...], pnb_ref[...])
    y = jnp.dot(xn, w2_ref[...],
                preferred_element_type=jnp.float32) + b2_ref[...]      # (ROWS, C_OUT)
    o_ref[...] = y.astype(o_ref.dtype)


# ---------------------------------------------------------------------------
# Parameters (deterministic init; Linear_Seasonal / Linear_Trend weights are
# 1/seq_len * ones exactly as in the torch __init__).
# ---------------------------------------------------------------------------
def init_params(key):
    keys = jax.random.split(key, 8)
    p = {}
    p["w_seasonal"] = jnp.full((SEQ_LEN, PRED_LEN), 1.0 / SEQ_LEN, jnp.float32)
    p["w_trend"] = jnp.full((SEQ_LEN, PRED_LEN), 1.0 / SEQ_LEN, jnp.float32)
    p["b_seasonal"] = 0.02 * jax.random.normal(keys[0], (1, PRED_LEN), jnp.float32)
    p["b_trend"] = 0.02 * jax.random.normal(keys[1], (1, PRED_LEN), jnp.float32)
    p["w_mm"] = jax.random.normal(keys[2], (PRED_LEN, EMB_DIM), jnp.float32) / jnp.sqrt(PRED_LEN)
    p["b_mm"] = 0.02 * jax.random.normal(keys[3], (1, EMB_DIM), jnp.float32)
    # simplified sLSTM block stack parameters
    p["ln_g"] = jnp.ones((NUM_BLOCKS, 1, EMB_DIM), jnp.float32)
    p["ln_b"] = jnp.zeros((NUM_BLOCKS, 1, EMB_DIM), jnp.float32)
    p["w_in"] = jax.random.normal(keys[4], (NUM_BLOCKS, EMB_DIM, 4 * EMB_DIM), jnp.float32) / jnp.sqrt(EMB_DIM)
    p["w_rec"] = jax.random.normal(keys[5], (NUM_BLOCKS, EMB_DIM, 4 * EMB_DIM), jnp.float32) / jnp.sqrt(EMB_DIM)
    p["b_gates"] = jnp.zeros((NUM_BLOCKS, 1, 4 * EMB_DIM), jnp.float32)
    p["post_g"] = jnp.ones((1, EMB_DIM), jnp.float32)
    p["post_b"] = jnp.zeros((1, EMB_DIM), jnp.float32)
    p["w_mm2"] = jax.random.normal(keys[6], (EMB_DIM, C_OUT), jnp.float32) / jnp.sqrt(EMB_DIM)
    p["b_mm2"] = 0.02 * jax.random.normal(keys[7], (1, C_OUT), jnp.float32)
    return p


def _moving_avg_matrix():
    """(T, T) matrix M with trend = x @ M.T for the replicate-padded
    AvgPool1d(kernel=MOVING_AVG, stride=1) used by series_decomp2."""
    M = np.zeros((SEQ_LEN, SEQ_LEN), np.float32)
    for t in range(SEQ_LEN):
        for j in range(-PAD, PAD + 1):
            s = min(max(t + j, 0), SEQ_LEN - 1)
            M[t, s] += 1.0 / MOVING_AVG
    return jnp.asarray(M)


def fold_params(p):
    """Fold moving-average decomposition + Linear_Seasonal/Trend + mm into one
    (T, E) matrix and a (1, E) bias (the whole chain is linear in x).
    Computed once, outside the per-step forward."""
    M = _moving_avg_matrix()
    eye = jnp.eye(SEQ_LEN, dtype=jnp.float32)
    w_total = ((eye - M).T @ p["w_seasonal"] + M.T @ p["w_trend"]) @ p["w_mm"]
    b_fold = (p["b_seasonal"] + p["b_trend"]) @ p["w_mm"] + p["b_mm"]
    fp = {k: p[k] for k in ("ln_g", "ln_b", "w_in", "w_rec", "b_gates",
                            "post_g", "post_b", "w_mm2", "b_mm2")}
    fp["w_total"] = w_total            # (T, E)
    fp["b_fold"] = b_fold              # (1, E)
    return fp


# ---------------------------------------------------------------------------
# Model forward (x_mark_enc / x_dec / x_mark_dec are unused by forecast()).
# ---------------------------------------------------------------------------
@jax.jit
def model_forward(x_enc, fp):
    B, T, C = x_enc.shape
    # (B, T, C) -> sequence-major 2-D slab: row = c*B + b, lanes = time.
    x2d = jnp.transpose(x_enc, (2, 0, 1)).reshape(C * B, T).astype(jnp.float32)

    def full(shape):
        return pl.BlockSpec(shape, lambda i: (0,) * len(shape))

    out2d = pl.pallas_call(
        _fused_kernel,
        grid=(1,),
        in_specs=[
            full((C * B, T)),                                  # x (sequence-major)
            full((SEQ_LEN, EMB_DIM)),                          # folded stage-1 weight
            full((1, EMB_DIM)),                                # folded stage-1 bias
            full((NUM_BLOCKS, 1, EMB_DIM)),                    # pre-LN gamma
            full((NUM_BLOCKS, 1, EMB_DIM)),                    # pre-LN beta
            full((NUM_BLOCKS, EMB_DIM, 4 * EMB_DIM)),          # w_in
            full((NUM_BLOCKS, EMB_DIM, 4 * EMB_DIM)),          # w_rec
            full((NUM_BLOCKS, 1, 4 * EMB_DIM)),                # gate bias
            full((1, EMB_DIM)),                                # post-LN gamma
            full((1, EMB_DIM)),                                # post-LN beta
            full((EMB_DIM, C_OUT)),                            # mm2 weight
            full((1, C_OUT)),                                  # mm2 bias
        ],
        out_specs=full((C * B, C_OUT)),
        out_shape=jax.ShapeDtypeStruct((C * B, C_OUT), jnp.float32),
        scratch_shapes=[pltpu.VMEM((C * B, EMB_DIM), jnp.float32)],  # per-block h sequence
        compiler_params=pltpu.CompilerParams(dimension_semantics=("arbitrary",)),
    )(x2d, fp["w_total"], fp["b_fold"], fp["ln_g"], fp["ln_b"], fp["w_in"],
      fp["w_rec"], fp["b_gates"], fp["post_g"], fp["post_b"],
      fp["w_mm2"], fp["b_mm2"])

    # dropout(p=DROPOUT_P) is identity in eval mode.
    # rows are (c*B + b)  ->  (B, c_out, C), matching torch's final permute.
    out = out2d.reshape(C, B, C_OUT).transpose(1, 2, 0)
    return out


if __name__ == "__main__":
    key = jax.random.PRNGKey(0)
    k_x, k_p = jax.random.split(key)
    x_enc = jax.random.normal(k_x, (BATCH, SEQ_LEN, ENC_IN), jnp.float32)
    x_mark_enc = x_dec = x_mark_dec = None   # unused by the forward pass
    params = init_params(k_p)
    fparams = fold_params(params)            # one-time linear fold of stage-1

    out = model_forward(x_enc, fparams)
    jax.block_until_ready(out)
    assert out.shape == (BATCH, C_OUT, ENC_IN), out.shape
    assert bool(jnp.all(jnp.isfinite(out)))
    print("KERNEL_OK")
</pallas_src>

<mosaic_0001>
module attributes {stable_mosaic.version = 11 : i64} {
  func.func @_fused_kernel(%arg0: i32, %arg1: memref<8x16xf32, #tpu.memory_space<vmem>>, %arg2: memref<16x32xf32, #tpu.memory_space<vmem>>, %arg3: memref<1x32xf32, #tpu.memory_space<vmem>>, %arg4: memref<2x1x32xf32, #tpu.memory_space<vmem>>, %arg5: memref<2x1x32xf32, #tpu.memory_space<vmem>>, %arg6: memref<2x32x128xf32, #tpu.memory_space<vmem>>, %arg7: memref<2x32x128xf32, #tpu.memory_space<vmem>>, %arg8: memref<2x1x128xf32, #tpu.memory_space<vmem>>, %arg9: memref<1x32xf32, #tpu.memory_space<vmem>>, %arg10: memref<1x32xf32, #tpu.memory_space<vmem>>, %arg11: memref<32x4xf32, #tpu.memory_space<vmem>>, %arg12: memref<1x4xf32, #tpu.memory_space<vmem>>, %arg13: memref<8x4xf32, #tpu.memory_space<vmem>>, %arg14: memref<8x32xf32, #tpu.memory_space<vmem>>) attributes {dimension_semantics = [#tpu.dimension_semantics<arbitrary>], iteration_bounds = array<i64: 1>, scalar_prefetch = 0 : i64, scratch_operands = 1 : i64, tpu.core_type = #tpu.core_type<tc>, window_params = [{pipeline_mode = #tpu.pipeline_mode<synchronous>, transform_indices = @transform_0, window_bounds = array<i64: 8, 16>}, {pipeline_mode = #tpu.pipeline_mode<synchronous>, transform_indices = @transform_1, window_bounds = array<i64: 16, 32>}, {pipeline_mode = #tpu.pipeline_mode<synchronous>, transform_indices = @transform_2, window_bounds = array<i64: 1, 32>}, {pipeline_mode = #tpu.pipeline_mode<synchronous>, transform_indices = @transform_3, window_bounds = array<i64: 2, 1, 32>}, {pipeline_mode = #tpu.pipeline_mode<synchronous>, transform_indices = @transform_4, window_bounds = array<i64: 2, 1, 32>}, {pipeline_mode = #tpu.pipeline_mode<synchronous>, transform_indices = @transform_5, window_bounds = array<i64: 2, 32, 128>}, {pipeline_mode = #tpu.pipeline_mode<synchronous>, transform_indices = @transform_6, window_bounds = array<i64: 2, 32, 128>}, {pipeline_mode = #tpu.pipeline_mode<synchronous>, transform_indices = @transform_7, window_bounds = array<i64: 2, 1, 128>}, {pipeline_mode = #tpu.pipeline_mode<synchronous>, transform_indices = @transform_8, window_bounds = array<i64: 1, 32>}, {pipeline_mode = #tpu.pipeline_mode<synchronous>, transform_indices = @transform_9, window_bounds = array<i64: 1, 32>}, {pipeline_mode = #tpu.pipeline_mode<synchronous>, transform_indices = @transform_10, window_bounds = array<i64: 32, 4>}, {pipeline_mode = #tpu.pipeline_mode<synchronous>, transform_indices = @transform_11, window_bounds = array<i64: 1, 4>}, {pipeline_mode = #tpu.pipeline_mode<synchronous>, transform_indices = @transform_12, window_bounds = array<i64: 8, 4>}]} {
    %c0 = arith.constant 0 : index
    %c0_0 = arith.constant 0 : index
    %0 = vector.load %arg1[%c0, %c0_0] : memref<8x16xf32, #tpu.memory_space<vmem>>, vector<8x16xf32>
    %c0_1 = arith.constant 0 : index
    %c0_2 = arith.constant 0 : index
    %1 = vector.load %arg2[%c0_1, %c0_2] : memref<16x32xf32, #tpu.memory_space<vmem>>, vector<16x32xf32>
    %cst = arith.constant dense<0.000000e+00> : vector<8x32xf32>
    %2 = tpu.matmul %0, %1, %cst {dimension_numbers = #tpu.dot_dimension_numbers<[1], [0], [0], [1], [0, 0, 1, 1], [], []>} : vector<8x16xf32>, vector<16x32xf32>, vector<8x32xf32> -> vector<8x32xf32>
    %c0_3 = arith.constant 0 : index
    %c0_4 = arith.constant 0 : index
    %3 = vector.load %arg3[%c0_3, %c0_4] : memref<1x32xf32, #tpu.memory_space<vmem>>, vector<1x32xf32>
    %4 = vector.broadcast %3 : vector<1x32xf32> to vector<8x32xf32>
    %5 = arith.addf %2, %4 : vector<8x32xf32>
    %c0_5 = arith.constant 0 : index
    %c0_6 = arith.constant 0 : index
    %c0_7 = arith.constant 0 : index
    %6 = vector.load %arg4[%c0_5, %c0_6, %c0_7] : memref<2x1x32xf32, #tpu.memory_space<vmem>>, vector<1x1x32xf32>
    %7 = vector.shape_cast %6 : vector<1x1x32xf32> to vector<1x32xf32>
    %c0_8 = arith.constant 0 : index
    %c0_9 = arith.constant 0 : index
    %c0_10 = arith.constant 0 : index
    %8 = vector.load %arg5[%c0_8, %c0_9, %c0_10] : memref<2x1x32xf32, #tpu.memory_space<vmem>>, vector<1x1x32xf32>
    %9 = vector.shape_cast %8 : vector<1x1x32xf32> to vector<1x32xf32>
    %cst_11 = arith.constant dense<0.000000e+00> : vector<8xf32>
    %10 = vector.multi_reduction <add>, %5, %cst_11 [1] : vector<8x32xf32> to vector<8xf32>
    %11 = vector.shape_cast %10 : vector<8xf32> to vector<8x1xf32>
    %cst_12 = arith.constant 3.200000e+01 : f32
    %12 = vector.broadcast %cst_12 : f32 to vector<8x1xf32>
    %13 = arith.divf %11, %12 : vector<8x1xf32>
    %14 = vector.broadcast %13 : vector<8x1xf32> to vector<8x32xf32>
    %15 = arith.subf %5, %14 : vector<8x32xf32>
    %16 = arith.mulf %15, %15 : vector<8x32xf32>
    %cst_13 = arith.constant dense<0.000000e+00> : vector<8xf32>
    %17 = vector.multi_reduction <add>, %16, %cst_13 [1] : vector<8x32xf32> to vector<8xf32>
    %18 = vector.shape_cast %17 : vector<8xf32> to vector<8x1xf32>
    %cst_14 = arith.constant 3.200000e+01 : f32
    %19 = vector.broadcast %cst_14 : f32 to vector<8x1xf32>
    %20 = arith.divf %18, %19 : vector<8x1xf32>
    %21 = vector.broadcast %13 : vector<8x1xf32> to vector<8x32xf32>
    %22 = arith.subf %5, %21 : vector<8x32xf32>
    %cst_15 = arith.constant 9.99999974E-6 : f32
    %23 = vector.broadcast %cst_15 : f32 to vector<8x1xf32>
    %24 = arith.addf %20, %23 : vector<8x1xf32>
    %25 = math.rsqrt %24 : vector<8x1xf32>
    %26 = vector.broadcast %25 : vector<8x1xf32> to vector<8x32xf32>
    %27 = arith.mulf %22, %26 : vector<8x32xf32>
    %28 = vector.broadcast %7 : vector<1x32xf32> to vector<8x32xf32>
    %29 = arith.mulf %27, %28 : vector<8x32xf32>
    %30 = vector.broadcast %9 : vector<1x32xf32> to vector<8x32xf32>
    %31 = arith.addf %29, %30 : vector<8x32xf32>
    %c0_16 = arith.constant 0 : index
    %c0_17 = arith.constant 0 : index
    %c0_18 = arith.constant 0 : index
    %32 = vector.load %arg6[%c0_16, %c0_17, %c0_18] : memref<2x32x128xf32, #tpu.memory_space<vmem>>, vector<1x32x128xf32>
    %33 = vector.shape_cast %32 : vector<1x32x128xf32> to vector<32x128xf32>
    %cst_19 = arith.constant dense<0.000000e+00> : vector<8x128xf32>
    %34 = tpu.matmul %31, %33, %cst_19 {dimension_numbers = #tpu.dot_dimension_numbers<[1], [0], [0], [1], [0, 0, 1, 1], [], []>} : vector<8x32xf32>, vector<32x128xf32>, vector<8x128xf32> -> vector<8x128xf32>
    %c0_20 = arith.constant 0 : index
    %c0_21 = arith.constant 0 : index
    %c0_22 = arith.constant 0 : index
    %35 = vector.load %arg8[%c0_20, %c0_21, %c0_22] : memref<2x1x128xf32, #tpu.memory_space<vmem>>, vector<1x1x128xf32>
    %36 = vector.shape_cast %35 : vector<1x1x128xf32> to vector<1x128xf32>
    %37 = vector.broadcast %36 : vector<1x128xf32> to vector<8x128xf32>
    %38 = arith.addf %34, %37 : vector<8x128xf32>
    %c0_23 = arith.constant 0 : index
    %c0_24 = arith.constant 0 : index
    %c0_25 = arith.constant 0 : index
    %39 = vector.load %arg7[%c0_23, %c0_24, %c0_25] : memref<2x32x128xf32, #tpu.memory_space<vmem>>, vector<1x32x128xf32>
    %40 = vector.shape_cast %39 : vector<1x32x128xf32> to vector<32x128xf32>
    %cst_26 = arith.constant 0.000000e+00 : f32
    %41 = vector.broadcast %cst_26 : f32 to vector<2x32xf32>
    %cst_27 = arith.constant 0.000000e+00 : f32
    %42 = vector.broadcast %cst_27 : f32 to vector<2x32xf32>
    %cst_28 = arith.constant 0.000000e+00 : f32
    %43 = vector.broadcast %cst_28 : f32 to vector<2x32xf32>
    %cst_29 = arith.constant 0.000000e+00 : f32
    %44 = vector.broadcast %cst_29 : f32 to vector<2x32xf32>
    %45 = vector.extract_strided_slice %38 {offsets = [0, 0], sizes = [2, 128], strides = [1, 1]} : vector<8x128xf32> to vector<2x128xf32>
    %cst_30 = arith.constant dense<0.000000e+00> : vector<2x128xf32>
    %46 = tpu.matmul %41, %40, %cst_30 {dimension_numbers = #tpu.dot_dimension_numbers<[1], [0], [0], [1], [0, 0, 1, 1], [], []>} : vector<2x32xf32>, vector<32x128xf32>, vector<2x128xf32> -> vector<2x128xf32>
    %47 = arith.addf %45, %46 : vector<2x128xf32>
    %48 = vector.extract_strided_slice %47 {offsets = [0, 0], sizes = [2, 32], strides = [1, 1]} : vector<2x128xf32> to vector<2x32xf32>
    %49 = vector.extract_strided_slice %47 {offsets = [0, 32], sizes = [2, 32], strides = [1, 1]} : vector<2x128xf32> to vector<2x32xf32>
    %50 = vector.extract_strided_slice %47 {offsets = [0, 64], sizes = [2, 32], strides = [1, 1]} : vector<2x128xf32> to vector<2x32xf32>
    %51 = vector.extract_strided_slice %47 {offsets = [0, 96], sizes = [2, 32], strides = [1, 1]} : vector<2x128xf32> to vector<2x32xf32>
    %cst_31 = arith.constant 0.000000e+00 : f32
    %52 = vector.broadcast %cst_31 : f32 to vector<2x32xf32>
    %53 = arith.minimumf %49, %52 : vector<2x32xf32>
    %54 = math.absf %49 : vector<2x32xf32>
    %cst_32 = arith.constant 0.000000e+00 : f32
    %55 = vector.broadcast %cst_32 : f32 to vector<2x32xf32>
    %56 = arith.subf %55, %54 : vector<2x32xf32>
    %57 = math.exp %56 : vector<2x32xf32>
    %cst_33 = arith.constant 1.000000e+00 : f32
    %58 = vector.broadcast %cst_33 : f32 to vector<2x32xf32>
    %59 = arith.addf %58, %57 : vector<2x32xf32>
    %60 = math.log %59 : vector<2x32xf32>
    %61 = arith.subf %53, %60 : vector<2x32xf32>
    %62 = arith.addf %61, %44 : vector<2x32xf32>
    %63 = arith.maximumf %62, %48 : vector<2x32xf32>
    %64 = arith.subf %48, %63 : vector<2x32xf32>
    %65 = math.exp %64 : vector<2x32xf32>
    %66 = arith.addf %61, %44 : vector<2x32xf32>
    %67 = arith.subf %66, %63 : vector<2x32xf32>
    %68 = math.exp %67 : vector<2x32xf32>
    %69 = math.tanh %50 : vector<2x32xf32>
    %70 = arith.negf %51 : vector<2x32xf32>
    %71 = math.exp %70 : vector<2x32xf32>
    %cst_34 = arith.constant 1.000000e+00 : f32
    %72 = vector.broadcast %cst_34 : f32 to vector<2x32xf32>
    %73 = arith.addf %72, %71 : vector<2x32xf32>
    %74 = arith.divf %72, %73 : vector<2x32xf32>
    %75 = arith.mulf %68, %42 : vector<2x32xf32>
    %76 = arith.mulf %65, %69 : vector<2x32xf32>
    %77 = arith.addf %75, %76 : vector<2x32xf32>
    %78 = arith.mulf %68, %43 : vector<2x32xf32>
    %79 = arith.addf %78, %65 : vector<2x32xf32>
    %80 = arith.mulf %74, %77 : vector<2x32xf32>
    %cst_35 = arith.constant 1.000000e+00 : f32
    %81 = vector.broadcast %cst_35 : f32 to vector<2x32xf32>
    %82 = arith.maximumf %79, %81 : vector<2x32xf32>
    %83 = tpu.reciprocal %82 {approx = true} : vector<2x32xf32> -> vector<2x32xf32>
    %84 = arith.mulf %80, %83 : vector<2x32xf32>
    %c0_36 = arith.constant 0 : index
    %c0_37 = arith.constant 0 : index
    %85 = vector.load %arg14[%c0_36, %c0_37] : memref<8x32xf32, #tpu.memory_space<vmem>>, vector<2x32xf32>
    tpu.vector_store %arg14[%c0_36, %c0_37], %84 {strides = array<i32>} : memref<8x32xf32, #tpu.memory_space<vmem>>, vector<2x32xf32>,
    %86 = vector.extract_strided_slice %38 {offsets = [2, 0], sizes = [2, 128], strides = [1, 1]} : vector<8x128xf32> to vector<2x128xf32>
    %cst_38 = arith.constant dense<0.000000e+00> : vector<2x128xf32>
    %87 = tpu.matmul %84, %40, %cst_38 {dimension_numbers = #tpu.dot_dimension_numbers<[1], [0], [0], [1], [0, 0, 1, 1], [], []>} : vector<2x32xf32>, vector<32x128xf32>, vector<2x128xf32> -> vector<2x128xf32>
    %88 = arith.addf %86, %87 : vector<2x128xf32>
    %89 = vector.extract_strided_slice %88 {offsets = [0, 0], sizes = [2, 32], strides = [1, 1]} : vector<2x128xf32> to vector<2x32xf32>
    %90 = vector.extract_strided_slice %88 {offsets = [0, 32], sizes = [2, 32], strides = [1, 1]} : vector<2x128xf32> to vector<2x32xf32>
    %91 = vector.extract_strided_slice %88 {offsets = [0, 64], sizes = [2, 32], strides = [1, 1]} : vector<2x128xf32> to vector<2x32xf32>
    %92 = vector.extract_strided_slice %88 {offsets = [0, 96], sizes = [2, 32], strides = [1, 1]} : vector<2x128xf32> to vector<2x32xf32>
    %cst_39 = arith.constant 0.000000e+00 : f32
    %93 = vector.broadcast %cst_39 : f32 to vector<2x32xf32>
    %94 = arith.minimumf %90, %93 : vector<2x32xf32>
    %95 = math.absf %90 : vector<2x32xf32>
    %cst_40 = arith.constant 0.000000e+00 : f32
    %96 = vector.broadcast %cst_40 : f32 to vector<2x32xf32>
    %97 = arith.subf %96, %95 : vector<2x32xf32>
    %98 = math.exp %97 : vector<2x32xf32>
    %cst_41 = arith.constant 1.000000e+00 : f32
    %99 = vector.broadcast %cst_41 : f32 to vector<2x32xf32>
    %100 = arith.addf %99, %98 : vector<2x32xf32>
    %101 = math.log %100 : vector<2x32xf32>
    %102 = arith.subf %94, %101 : vector<2x32xf32>
    %103 = arith.addf %102, %63 : vector<2x32xf32>
    %104 = arith.maximumf %103, %89 : vector<2x32xf32>
    %105 = arith.subf %89, %104 : vector<2x32xf32>
    %106 = math.exp %105 : vector<2x32xf32>
    %107 = arith.addf %102, %63 : vector<2x32xf32>
    %108 = arith.subf %107, %104 : vector<2x32xf32>
    %109 = math.exp %108 : vector<2x32xf32>
    %110 = math.tanh %91 : vector<2x32xf32>
    %111 = arith.negf %92 : vector<2x32xf32>
    %112 = math.exp %111 : vector<2x32xf32>
    %cst_42 = arith.constant 1.000000e+00 : f32
    %113 = vector.broadcast %cst_42 : f32 to vector<2x32xf32>
    %114 = arith.addf %113, %112 : vector<2x32xf32>
    %115 = arith.divf %113, %114 : vector<2x32xf32>
    %116 = arith.mulf %109, %77 : vector<2x32xf32>
    %117 = arith.mulf %106, %110 : vector<2x32xf32>
    %118 = arith.addf %116, %117 : vector<2x32xf32>
    %119 = arith.mulf %109, %79 : vector<2x32xf32>
    %120 = arith.addf %119, %106 : vector<2x32xf32>
    %121 = arith.mulf %115, %118 : vector<2x32xf32>
    %cst_43 = arith.constant 1.000000e+00 : f32
    %122 = vector.broadcast %cst_43 : f32 to vector<2x32xf32>
    %123 = arith.maximumf %120, %122 : vector<2x32xf32>
    %124 = tpu.reciprocal %123 {approx = true} : vector<2x32xf32> -> vector<2x32xf32>
    %125 = arith.mulf %121, %124 : vector<2x32xf32>
    %c2 = arith.constant 2 : index
    %c0_44 = arith.constant 0 : index
    %126 = vector.load %arg14[%c2, %c0_44] : memref<8x32xf32, #tpu.memory_space<vmem>>, vector<2x32xf32>
    tpu.vector_store %arg14[%c2, %c0_44], %125 {strides = array<i32>} : memref<8x32xf32, #tpu.memory_space<vmem>>, vector<2x32xf32>,
    %127 = vector.extract_strided_slice %38 {offsets = [4, 0], sizes = [2, 128], strides = [1, 1]} : vector<8x128xf32> to vector<2x128xf32>
    %cst_45 = arith.constant dense<0.000000e+00> : vector<2x128xf32>
    %128 = tpu.matmul %125, %40, %cst_45 {dimension_numbers = #tpu.dot_dimension_numbers<[1], [0], [0], [1], [0, 0, 1, 1], [], []>} : vector<2x32xf32>, vector<32x128xf32>, vector<2x128xf32> -> vector<2x128xf32>
    %129 = arith.addf %127, %128 : vector<2x128xf32>
    %130 = vector.extract_strided_slice %129 {offsets = [0, 0], sizes = [2, 32], strides = [1, 1]} : vector<2x128xf32> to vector<2x32xf32>
    %131 = vector.extract_strided_slice %129 {offsets = [0, 32], sizes = [2, 32], strides = [1, 1]} : vector<2x128xf32> to vector<2x32xf32>
    %132 = vector.extract_strided_slice %129 {offsets = [0, 64], sizes = [2, 32], strides = [1, 1]} : vector<2x128xf32> to vector<2x32xf32>
    %133 = vector.extract_strided_slice %129 {offsets = [0, 96], sizes = [2, 32], strides = [1, 1]} : vector<2x128xf32> to vector<2x32xf32>
    %cst_46 = arith.constant 0.000000e+00 : f32
    %134 = vector.broadcast %cst_46 : f32 to vector<2x32xf32>
    %135 = arith.minimumf %131, %134 : vector<2x32xf32>
    %136 = math.absf %131 : vector<2x32xf32>
    %cst_47 = arith.constant 0.000000e+00 : f32
    %137 = vector.broadcast %cst_47 : f32 to vector<2x32xf32>
    %138 = arith.subf %137, %136 : vector<2x32xf32>
    %139 = math.exp %138 : vector<2x32xf32>
    %cst_48 = arith.constant 1.000000e+00 : f32
    %140 = vector.broadcast %cst_48 : f32 to vector<2x32xf32>
    %141 = arith.addf %140, %139 : vector<2x32xf32>
    %142 = math.log %141 : vector<2x32xf32>
    %143 = arith.subf %135, %142 : vector<2x32xf32>
    %144 = arith.addf %143, %104 : vector<2x32xf32>
    %145 = arith.maximumf %144, %130 : vector<2x32xf32>
    %146 = arith.subf %130, %145 : vector<2x32xf32>
    %147 = math.exp %146 : vector<2x32xf32>
    %148 = arith.addf %143, %104 : vector<2x32xf32>
    %149 = arith.subf %148, %145 : vector<2x32xf32>
    %150 = math.exp %149 : vector<2x32xf32>
    %151 = math.tanh %132 : vector<2x32xf32>
    %152 = arith.negf %133 : vector<2x32xf32>
    %153 = math.exp %152 : vector<2x32xf32>
    %cst_49 = arith.constant 1.000000e+00 : f32
    %154 = vector.broadcast %cst_49 : f32 to vector<2x32xf32>
    %155 = arith.addf %154, %153 : vector<2x32xf32>
    %156 = arith.divf %154, %155 : vector<2x32xf32>
    %157 = arith.mulf %150, %118 : vector<2x32xf32>
    %158 = arith.mulf %147, %151 : vector<2x32xf32>
    %159 = arith.addf %157, %158 : vector<2x32xf32>
    %160 = arith.mulf %150, %120 : vector<2x32xf32>
    %161 = arith.addf %160, %147 : vector<2x32xf32>
    %162 = arith.mulf %156, %159 : vector<2x32xf32>
    %cst_50 = arith.constant 1.000000e+00 : f32
    %163 = vector.broadcast %cst_50 : f32 to vector<2x32xf32>
    %164 = arith.maximumf %161, %163 : vector<2x32xf32>
    %165 = tpu.reciprocal %164 {approx = true} : vector<2x32xf32> -> vector<2x32xf32>
    %166 = arith.mulf %162, %165 : vector<2x32xf32>
    %c4 = arith.constant 4 : index
    %c0_51 = arith.constant 0 : index
    %167 = vector.load %arg14[%c4, %c0_51] : memref<8x32xf32, #tpu.memory_space<vmem>>, vector<2x32xf32>
    tpu.vector_store %arg14[%c4, %c0_51], %166 {strides = array<i32>} : memref<8x32xf32, #tpu.memory_space<vmem>>, vector<2x32xf32>,
    %168 = vector.extract_strided_slice %38 {offsets = [6, 0], sizes = [2, 128], strides = [1, 1]} : vector<8x128xf32> to vector<2x128xf32>
    %cst_52 = arith.constant dense<0.000000e+00> : vector<2x128xf32>
    %169 = tpu.matmul %166, %40, %cst_52 {dimension_numbers = #tpu.dot_dimension_numbers<[1], [0], [0], [1], [0, 0, 1, 1], [], []>} : vector<2x32xf32>, vector<32x128xf32>, vector<2x128xf32> -> vector<2x128xf32>
    %170 = arith.addf %168, %169 : vector<2x128xf32>
    %171 = vector.extract_strided_slice %170 {offsets = [0, 0], sizes = [2, 32], strides = [1, 1]} : vector<2x128xf32> to vector<2x32xf32>
    %172 = vector.extract_strided_slice %170 {offsets = [0, 32], sizes = [2, 32], strides = [1, 1]} : vector<2x128xf32> to vector<2x32xf32>
    %173 = vector.extract_strided_slice %170 {offsets = [0, 64], sizes = [2, 32], strides = [1, 1]} : vector<2x128xf32> to vector<2x32xf32>
    %174 = vector.extract_strided_slice %170 {offsets = [0, 96], sizes = [2, 32], strides = [1, 1]} : vector<2x128xf32> to vector<2x32xf32>
    %cst_53 = arith.constant 0.000000e+00 : f32
    %175 = vector.broadcast %cst_53 : f32 to vector<2x32xf32>
    %176 = arith.minimumf %172, %175 : vector<2x32xf32>
    %177 = math.absf %172 : vector<2x32xf32>
    %cst_54 = arith.constant 0.000000e+00 : f32
    %178 = vector.broadcast %cst_54 : f32 to vector<2x32xf32>
    %179 = arith.subf %178, %177 : vector<2x32xf32>
    %180 = math.exp %179 : vector<2x32xf32>
    %cst_55 = arith.constant 1.000000e+00 : f32
    %181 = vector.broadcast %cst_55 : f32 to vector<2x32xf32>
    %182 = arith.addf %181, %180 : vector<2x32xf32>
    %183 = math.log %182 : vector<2x32xf32>
    %184 = arith.subf %176, %183 : vector<2x32xf32>
    %185 = arith.addf %184, %145 : vector<2x32xf32>
    %186 = arith.maximumf %185, %171 : vector<2x32xf32>
    %187 = arith.subf %171, %186 : vector<2x32xf32>
    %188 = math.exp %187 : vector<2x32xf32>
    %189 = arith.addf %184, %145 : vector<2x32xf32>
    %190 = arith.subf %189, %186 : vector<2x32xf32>
    %191 = math.exp %190 : vector<2x32xf32>
    %192 = math.tanh %173 : vector<2x32xf32>
    %193 = arith.negf %174 : vector<2x32xf32>
    %194 = math.exp %193 : vector<2x32xf32>
    %cst_56 = arith.constant 1.000000e+00 : f32
    %195 = vector.broadcast %cst_56 : f32 to vector<2x32xf32>
    %196 = arith.addf %195, %194 : vector<2x32xf32>
    %197 = arith.divf %195, %196 : vector<2x32xf32>
    %198 = arith.mulf %191, %159 : vector<2x32xf32>
    %199 = arith.mulf %188, %192 : vector<2x32xf32>
    %200 = arith.addf %198, %199 : vector<2x32xf32>
    %201 = arith.mulf %191, %161 : vector<2x32xf32>
    %202 = arith.addf %201, %188 : vector<2x32xf32>
    %203 = arith.mulf %197, %200 : vector<2x32xf32>
    %cst_57 = arith.constant 1.000000e+00 : f32
    %204 = vector.broadcast %cst_57 : f32 to vector<2x32xf32>
    %205 = arith.maximumf %202, %204 : vector<2x32xf32>
    %206 = tpu.reciprocal %205 {approx = true} : vector<2x32xf32> -> vector<2x32xf32>
    %207 = arith.mulf %203, %206 : vector<2x32xf32>
    %c6 = arith.constant 6 : index
    %c0_58 = arith.constant 0 : index
    %208 = vector.load %arg14[%c6, %c0_58] : memref<8x32xf32, #tpu.memory_space<vmem>>, vector<2x32xf32>
    tpu.vector_store %arg14[%c6, %c0_58], %207 {strides = array<i32>} : memref<8x32xf32, #tpu.memory_space<vmem>>, vector<2x32xf32>,
    %c0_59 = arith.constant 0 : index
    %c0_60 = arith.constant 0 : index
    %209 = vector.load %arg14[%c0_59, %c0_60] : memref<8x32xf32, #tpu.memory_space<vmem>>, vector<8x32xf32>
    %210 = arith.addf %5, %209 : vector<8x32xf32>
    %c1 = arith.constant 1 : index
    %c0_61 = arith.constant 0 : index
    %c0_62 = arith.constant 0 : index
    %211 = vector.load %arg4[%c1, %c0_61, %c0_62] : memref<2x1x32xf32, #tpu.memory_space<vmem>>, vector<1x1x32xf32>
    %212 = vector.shape_cast %211 : vector<1x1x32xf32> to vector<1x32xf32>
    %c1_63 = arith.constant 1 : index
    %c0_64 = arith.constant 0 : index
    %c0_65 = arith.constant 0 : index
    %213 = vector.load %arg5[%c1_63, %c0_64, %c0_65] : memref<2x1x32xf32, #tpu.memory_space<vmem>>, vector<1x1x32xf32>
    %214 = vector.shape_cast %213 : vector<1x1x32xf32> to vector<1x32xf32>
    %cst_66 = arith.constant dense<0.000000e+00> : vector<8xf32>
    %215 = vector.multi_reduction <add>, %210, %cst_66 [1] : vector<8x32xf32> to vector<8xf32>
    %216 = vector.shape_cast %215 : vector<8xf32> to vector<8x1xf32>
    %cst_67 = arith.constant 3.200000e+01 : f32
    %217 = vector.broadcast %cst_67 : f32 to vector<8x1xf32>
    %218 = arith.divf %216, %217 : vector<8x1xf32>
    %219 = vector.broadcast %218 : vector<8x1xf32> to vector<8x32xf32>
    %220 = arith.subf %210, %219 : vector<8x32xf32>
    %221 = arith.mulf %220, %220 : vector<8x32xf32>
    %cst_68 = arith.constant dense<0.000000e+00> : vector<8xf32>
    %222 = vector.multi_reduction <add>, %221, %cst_68 [1] : vector<8x32xf32> to vector<8xf32>
    %223 = vector.shape_cast %222 : vector<8xf32> to vector<8x1xf32>
    %cst_69 = arith.constant 3.200000e+01 : f32
    %224 = vector.broadcast %cst_69 : f32 to vector<8x1xf32>
    %225 = arith.divf %223, %224 : vector<8x1xf32>
    %226 = vector.broadcast %218 : vector<8x1xf32> to vector<8x32xf32>
    %227 = arith.subf %210, %226 : vector<8x32xf32>
    %cst_70 = arith.constant 9.99999974E-6 : f32
    %228 = vector.broadcast %cst_70 : f32 to vector<8x1xf32>
    %229 = arith.addf %225, %228 : vector<8x1xf32>
    %230 = math.rsqrt %229 : vector<8x1xf32>
    %231 = vector.broadcast %230 : vector<8x1xf32> to vector<8x32xf32>
    %232 = arith.mulf %227, %231 : vector<8x32xf32>
    %233 = vector.broadcast %212 : vector<1x32xf32> to vector<8x32xf32>
    %234 = arith.mulf %232, %233 : vector<8x32xf32>
    %235 = vector.broadcast %214 : vector<1x32xf32> to vector<8x32xf32>
    %236 = arith.addf %234, %235 : vector<8x32xf32>
    %c1_71 = arith.constant 1 : index
    %c0_72 = arith.constant 0 : index
    %c0_73 = arith.constant 0 : index
    %237 = vector.load %arg6[%c1_71, %c0_72, %c0_73] : memref<2x32x128xf32, #tpu.memory_space<vmem>>, vector<1x32x128xf32>
    %238 = vector.shape_cast %237 : vector<1x32x128xf32> to vector<32x128xf32>
    %cst_74 = arith.constant dense<0.000000e+00> : vector<8x128xf32>
    %239 = tpu.matmul %236, %238, %cst_74 {dimension_numbers = #tpu.dot_dimension_numbers<[1], [0], [0], [1], [0, 0, 1, 1], [], []>} : vector<8x32xf32>, vector<32x128xf32>, vector<8x128xf32> -> vector<8x128xf32>
    %c1_75 = arith.constant 1 : index
    %c0_76 = arith.constant 0 : index
    %c0_77 = arith.constant 0 : index
    %240 = vector.load %arg8[%c1_75, %c0_76, %c0_77] : memref<2x1x128xf32, #tpu.memory_space<vmem>>, vector<1x1x128xf32>
    %241 = vector.shape_cast %240 : vector<1x1x128xf32> to vector<1x128xf32>
    %242 = vector.broadcast %241 : vector<1x128xf32> to vector<8x128xf32>
    %243 = arith.addf %239, %242 : vector<8x128xf32>
    %c1_78 = arith.constant 1 : index
    %c0_79 = arith.constant 0 : index
    %c0_80 = arith.constant 0 : index
    %244 = vector.load %arg7[%c1_78, %c0_79, %c0_80] : memref<2x32x128xf32, #tpu.memory_space<vmem>>, vector<1x32x128xf32>
    %245 = vector.shape_cast %244 : vector<1x32x128xf32> to vector<32x128xf32>
    %cst_81 = arith.constant 0.000000e+00 : f32
    %246 = vector.broadcast %cst_81 : f32 to vector<2x32xf32>
    %cst_82 = arith.constant 0.000000e+00 : f32
    %247 = vector.broadcast %cst_82 : f32 to vector<2x32xf32>
    %cst_83 = arith.constant 0.000000e+00 : f32
    %248 = vector.broadcast %cst_83 : f32 to vector<2x32xf32>
    %cst_84 = arith.constant 0.000000e+00 : f32
    %249 = vector.broadcast %cst_84 : f32 to vector<2x32xf32>
    %250 = vector.extract_strided_slice %243 {offsets = [0, 0], sizes = [2, 128], strides = [1, 1]} : vector<8x128xf32> to vector<2x128xf32>
    %cst_85 = arith.constant dense<0.000000e+00> : vector<2x128xf32>
    %251 = tpu.matmul %246, %245, %cst_85 {dimension_numbers = #tpu.dot_dimension_numbers<[1], [0], [0], [1], [0, 0, 1, 1], [], []>} : vector<2x32xf32>, vector<32x128xf32>, vector<2x128xf32> -> vector<2x128xf32>
    %252 = arith.addf %250, %251 : vector<2x128xf32>
    %253 = vector.extract_strided_slice %252 {offsets = [0, 0], sizes = [2, 32], strides = [1, 1]} : vector<2x128xf32> to vector<2x32xf32>
    %254 = vector.extract_strided_slice %252 {offsets = [0, 32], sizes = [2, 32], strides = [1, 1]} : vector<2x128xf32> to vector<2x32xf32>
    %255 = vector.extract_strided_slice %252 {offsets = [0, 64], sizes = [2, 32], strides = [1, 1]} : vector<2x128xf32> to vector<2x32xf32>
    %256 = vector.extract_strided_slice %252 {offsets = [0, 96], sizes = [2, 32], strides = [1, 1]} : vector<2x128xf32> to vector<2x32xf32>
    %cst_86 = arith.constant 0.000000e+00 : f32
    %257 = vector.broadcast %cst_86 : f32 to vector<2x32xf32>
    %258 = arith.minimumf %254, %257 : vector<2x32xf32>
    %259 = math.absf %254 : vector<2x32xf32>
    %cst_87 = arith.constant 0.000000e+00 : f32
    %260 = vector.broadcast %cst_87 : f32 to vector<2x32xf32>
    %261 = arith.subf %260, %259 : vector<2x32xf32>
    %262 = math.exp %261 : vector<2x32xf32>
    %cst_88 = arith.constant 1.000000e+00 : f32
    %263 = vector.broadcast %cst_88 : f32 to vector<2x32xf32>
    %264 = arith.addf %263, %262 : vector<2x32xf32>
    %265 = math.log %264 : vector<2x32xf32>
    %266 = arith.subf %258, %265 : vector<2x32xf32>
    %267 = arith.addf %266, %249 : vector<2x32xf32>
    %268 = arith.maximumf %267, %253 : vector<2x32xf32>
    %269 = arith.subf %253, %268 : vector<2x32xf32>
    %270 = math.exp %269 : vector<2x32xf32>
    %271 = arith.addf %266, %249 : vector<2x32xf32>
    %272 = arith.subf %271, %268 : vector<2x32xf32>
    %273 = math.exp %272 : vector<2x32xf32>
    %274 = math.tanh %255 : vector<2x32xf32>
    %275 = arith.negf %256 : vector<2x32xf32>
    %276 = math.exp %275 : vector<2x32xf32>
    %cst_89 = arith.constant 1.000000e+00 : f32
    %277 = vector.broadcast %cst_89 : f32 to vector<2x32xf32>
    %278 = arith.addf %277, %276 : vector<2x32xf32>
    %279 = arith.divf %277, %278 : vector<2x32xf32>
    %280 = arith.mulf %273, %247 : vector<2x32xf32>
    %281 = arith.mulf %270, %274 : vector<2x32xf32>
    %282 = arith.addf %280, %281 : vector<2x32xf32>
    %283 = arith.mulf %273, %248 : vector<2x32xf32>
    %284 = arith.addf %283, %270 : vector<2x32xf32>
    %285 = arith.mulf %279, %282 : vector<2x32xf32>
    %cst_90 = arith.constant 1.000000e+00 : f32
    %286 = vector.broadcast %cst_90 : f32 to vector<2x32xf32>
    %287 = arith.maximumf %284, %286 : vector<2x32xf32>
    %288 = tpu.reciprocal %287 {approx = true} : vector<2x32xf32> -> vector<2x32xf32>
    %289 = arith.mulf %285, %288 : vector<2x32xf32>
    %c0_91 = arith.constant 0 : index
    %c0_92 = arith.constant 0 : index
    %290 = vector.load %arg14[%c0_91, %c0_92] : memref<8x32xf32, #tpu.memory_space<vmem>>, vector<2x32xf32>
    tpu.vector_store %arg14[%c0_91, %c0_92], %289 {strides = array<i32>} : memref<8x32xf32, #tpu.memory_space<vmem>>, vector<2x32xf32>,
    %291 = vector.extract_strided_slice %243 {offsets = [2, 0], sizes = [2, 128], strides = [1, 1]} : vector<8x128xf32> to vector<2x128xf32>
    %cst_93 = arith.constant dense<0.000000e+00> : vector<2x128xf32>
    %292 = tpu.matmul %289, %245, %cst_93 {dimension_numbers = #tpu.dot_dimension_numbers<[1], [0], [0], [1], [0, 0, 1, 1], [], []>} : vector<2x32xf32>, vector<32x128xf32>, vector<2x128xf32> -> vector<2x128xf32>
    %293 = arith.addf %291, %292 : vector<2x128xf32>
    %294 = vector.extract_strided_slice %293 {offsets = [0, 0], sizes = [2, 32], strides = [1, 1]} : vector<2x128xf32> to vector<2x32xf32>
    %295 = vector.extract_strided_slice %293 {offsets = [0, 32], sizes = [2, 32], strides = [1, 1]} : vector<2x128xf32> to vector<2x32xf32>
    %296 = vector.extract_strided_slice %293 {offsets = [0, 64], sizes = [2, 32], strides = [1, 1]} : vector<2x128xf32> to vector<2x32xf32>
    %297 = vector.extract_strided_slice %293 {offsets = [0, 96], sizes = [2, 32], strides = [1, 1]} : vector<2x128xf32> to vector<2x32xf32>
    %cst_94 = arith.constant 0.000000e+00 : f32
    %298 = vector.broadcast %cst_94 : f32 to vector<2x32xf32>
    %299 = arith.minimumf %295, %298 : vector<2x32xf32>
    %300 = math.absf %295 : vector<2x32xf32>
    %cst_95 = arith.constant 0.000000e+00 : f32
    %301 = vector.broadcast %cst_95 : f32 to vector<2x32xf32>
    %302 = arith.subf %301, %300 : vector<2x32xf32>
    %303 = math.exp %302 : vector<2x32xf32>
    %cst_96 = arith.constant 1.000000e+00 : f32
    %304 = vector.broadcast %cst_96 : f32 to vector<2x32xf32>
    %305 = arith.addf %304, %303 : vector<2x32xf32>
    %306 = math.log %305 : vector<2x32xf32>
    %307 = arith.subf %299, %306 : vector<2x32xf32>
    %308 = arith.addf %307, %268 : vector<2x32xf32>
    %309 = arith.maximumf %308, %294 : vector<2x32xf32>
    %310 = arith.subf %294, %309 : vector<2x32xf32>
    %311 = math.exp %310 : vector<2x32xf32>
    %312 = arith.addf %307, %268 : vector<2x32xf32>
    %313 = arith.subf %312, %309 : vector<2x32xf32>
    %314 = math.exp %313 : vector<2x32xf32>
    %315 = math.tanh %296 : vector<2x32xf32>
    %316 = arith.negf %297 : vector<2x32xf32>
    %317 = math.exp %316 : vector<2x32xf32>
    %cst_97 = arith.constant 1.000000e+00 : f32
    %318 = vector.broadcast %cst_97 : f32 to vector<2x32xf32>
    %319 = arith.addf %318, %317 : vector<2x32xf32>
    %320 = arith.divf %318, %319 : vector<2x32xf32>
    %321 = arith.mulf %314, %282 : vector<2x32xf32>
    %322 = arith.mulf %311, %315 : vector<2x32xf32>
    %323 = arith.addf %321, %322 : vector<2x32xf32>
    %324 = arith.mulf %314, %284 : vector<2x32xf32>
    %325 = arith.addf %324, %311 : vector<2x32xf32>
    %326 = arith.mulf %320, %323 : vector<2x32xf32>
    %cst_98 = arith.constant 1.000000e+00 : f32
    %327 = vector.broadcast %cst_98 : f32 to vector<2x32xf32>
    %328 = arith.maximumf %325, %327 : vector<2x32xf32>
    %329 = tpu.reciprocal %328 {approx = true} : vector<2x32xf32> -> vector<2x32xf32>
    %330 = arith.mulf %326, %329 : vector<2x32xf32>
    %c2_99 = arith.constant 2 : index
    %c0_100 = arith.constant 0 : index
    %331 = vector.load %arg14[%c2_99, %c0_100] : memref<8x32xf32, #tpu.memory_space<vmem>>, vector<2x32xf32>
    tpu.vector_store %arg14[%c2_99, %c0_100], %330 {strides = array<i32>} : memref<8x32xf32, #tpu.memory_space<vmem>>, vector<2x32xf32>,
    %332 = vector.extract_strided_slice %243 {offsets = [4, 0], sizes = [2, 128], strides = [1, 1]} : vector<8x128xf32> to vector<2x128xf32>
    %cst_101 = arith.constant dense<0.000000e+00> : vector<2x128xf32>
    %333 = tpu.matmul %330, %245, %cst_101 {dimension_numbers = #tpu.dot_dimension_numbers<[1], [0], [0], [1], [0, 0, 1, 1], [], []>} : vector<2x32xf32>, vector<32x128xf32>, vector<2x128xf32> -> vector<2x128xf32>
    %334 = arith.addf %332, %333 : vector<2x128xf32>
    %335 = vector.extract_strided_slice %334 {offsets = [0, 0], sizes = [2, 32], strides = [1, 1]} : vector<2x128xf32> to vector<2x32xf32>
    %336 = vector.extract_strided_slice %334 {offsets = [0, 32], sizes = [2, 32], strides = [1, 1]} : vector<2x128xf32> to vector<2x32xf32>
    %337 = vector.extract_strided_slice %334 {offsets = [0, 64], sizes = [2, 32], strides = [1, 1]} : vector<2x128xf32> to vector<2x32xf32>
    %338 = vector.extract_strided_slice %334 {offsets = [0, 96], sizes = [2, 32], strides = [1, 1]} : vector<2x128xf32> to vector<2x32xf32>
    %cst_102 = arith.constant 0.000000e+00 : f32
    %339 = vector.broadcast %cst_102 : f32 to vector<2x32xf32>
    %340 = arith.minimumf %336, %339 : vector<2x32xf32>
    %341 = math.absf %336 : vector<2x32xf32>
    %cst_103 = arith.constant 0.000000e+00 : f32
    %342 = vector.broadcast %cst_103 : f32 to vector<2x32xf32>
    %343 = arith.subf %342, %341 : vector<2x32xf32>
    %344 = math.exp %343 : vector<2x32xf32>
    %cst_104 = arith.constant 1.000000e+00 : f32
    %345 = vector.broadcast %cst_104 : f32 to vector<2x32xf32>
    %346 = arith.addf %345, %344 : vector<2x32xf32>
    %347 = math.log %346 : vector<2x32xf32>
    %348 = arith.subf %340, %347 : vector<2x32xf32>
    %349 = arith.addf %348, %309 : vector<2x32xf32>
    %350 = arith.maximumf %349, %335 : vector<2x32xf32>
    %351 = arith.subf %335, %350 : vector<2x32xf32>
    %352 = math.exp %351 : vector<2x32xf32>
    %353 = arith.addf %348, %309 : vector<2x32xf32>
    %354 = arith.subf %353, %350 : vector<2x32xf32>
    %355 = math.exp %354 : vector<2x32xf32>
    %356 = math.tanh %337 : vector<2x32xf32>
    %357 = arith.negf %338 : vector<2x32xf32>
    %358 = math.exp %357 : vector<2x32xf32>
    %cst_105 = arith.constant 1.000000e+00 : f32
    %359 = vector.broadcast %cst_105 : f32 to vector<2x32xf32>
    %360 = arith.addf %359, %358 : vector<2x32xf32>
    %361 = arith.divf %359, %360 : vector<2x32xf32>
    %362 = arith.mulf %355, %323 : vector<2x32xf32>
    %363 = arith.mulf %352, %356 : vector<2x32xf32>
    %364 = arith.addf %362, %363 : vector<2x32xf32>
    %365 = arith.mulf %355, %325 : vector<2x32xf32>
    %366 = arith.addf %365, %352 : vector<2x32xf32>
    %367 = arith.mulf %361, %364 : vector<2x32xf32>
    %cst_106 = arith.constant 1.000000e+00 : f32
    %368 = vector.broadcast %cst_106 : f32 to vector<2x32xf32>
    %369 = arith.maximumf %366, %368 : vector<2x32xf32>
    %370 = tpu.reciprocal %369 {approx = true} : vector<2x32xf32> -> vector<2x32xf32>
    %371 = arith.mulf %367, %370 : vector<2x32xf32>
    %c4_107 = arith.constant 4 : index
    %c0_108 = arith.constant 0 : index
    %372 = vector.load %arg14[%c4_107, %c0_108] : memref<8x32xf32, #tpu.memory_space<vmem>>, vector<2x32xf32>
    tpu.vector_store %arg14[%c4_107, %c0_108], %371 {strides = array<i32>} : memref<8x32xf32, #tpu.memory_space<vmem>>, vector<2x32xf32>,
    %373 = vector.extract_strided_slice %243 {offsets = [6, 0], sizes = [2, 128], strides = [1, 1]} : vector<8x128xf32> to vector<2x128xf32>
    %cst_109 = arith.constant dense<0.000000e+00> : vector<2x128xf32>
    %374 = tpu.matmul %371, %245, %cst_109 {dimension_numbers = #tpu.dot_dimension_numbers<[1], [0], [0], [1], [0, 0, 1, 1], [], []>} : vector<2x32xf32>, vector<32x128xf32>, vector<2x128xf32> -> vector<2x128xf32>
    %375 = arith.addf %373, %374 : vector<2x128xf32>
    %376 = vector.extract_strided_slice %375 {offsets = [0, 0], sizes = [2, 32], strides = [1, 1]} : vector<2x128xf32> to vector<2x32xf32>
    %377 = vector.extract_strided_slice %375 {offsets = [0, 32], sizes = [2, 32], strides = [1, 1]} : vector<2x128xf32> to vector<2x32xf32>
    %378 = vector.extract_strided_slice %375 {offsets = [0, 64], sizes = [2, 32], strides = [1, 1]} : vector<2x128xf32> to vector<2x32xf32>
    %379 = vector.extract_strided_slice %375 {offsets = [0, 96], sizes = [2, 32], strides = [1, 1]} : vector<2x128xf32> to vector<2x32xf32>
    %cst_110 = arith.constant 0.000000e+00 : f32
    %380 = vector.broadcast %cst_110 : f32 to vector<2x32xf32>
    %381 = arith.minimumf %377, %380 : vector<2x32xf32>
    %382 = math.absf %377 : vector<2x32xf32>
    %cst_111 = arith.constant 0.000000e+00 : f32
    %383 = vector.broadcast %cst_111 : f32 to vector<2x32xf32>
    %384 = arith.subf %383, %382 : vector<2x32xf32>
    %385 = math.exp %384 : vector<2x32xf32>
    %cst_112 = arith.constant 1.000000e+00 : f32
    %386 = vector.broadcast %cst_112 : f32 to vector<2x32xf32>
    %387 = arith.addf %386, %385 : vector<2x32xf32>
    %388 = math.log %387 : vector<2x32xf32>
    %389 = arith.subf %381, %388 : vector<2x32xf32>
    %390 = arith.addf %389, %350 : vector<2x32xf32>
    %391 = arith.maximumf %390, %376 : vector<2x32xf32>
    %392 = arith.subf %376, %391 : vector<2x32xf32>
    %393 = math.exp %392 : vector<2x32xf32>
    %394 = arith.addf %389, %350 : vector<2x32xf32>
    %395 = arith.subf %394, %391 : vector<2x32xf32>
    %396 = math.exp %395 : vector<2x32xf32>
    %397 = math.tanh %378 : vector<2x32xf32>
    %398 = arith.negf %379 : vector<2x32xf32>
    %399 = math.exp %398 : vector<2x32xf32>
    %cst_113 = arith.constant 1.000000e+00 : f32
    %400 = vector.broadcast %cst_113 : f32 to vector<2x32xf32>
    %401 = arith.addf %400, %399 : vector<2x32xf32>
    %402 = arith.divf %400, %401 : vector<2x32xf32>
    %403 = arith.mulf %396, %364 : vector<2x32xf32>
    %404 = arith.mulf %393, %397 : vector<2x32xf32>
    %405 = arith.addf %403, %404 : vector<2x32xf32>
    %406 = arith.mulf %396, %366 : vector<2x32xf32>
    %407 = arith.addf %406, %393 : vector<2x32xf32>
    %408 = arith.mulf %402, %405 : vector<2x32xf32>
    %cst_114 = arith.constant 1.000000e+00 : f32
    %409 = vector.broadcast %cst_114 : f32 to vector<2x32xf32>
    %410 = arith.maximumf %407, %409 : vector<2x32xf32>
    %411 = tpu.reciprocal %410 {approx = true} : vector<2x32xf32> -> vector<2x32xf32>
    %412 = arith.mulf %408, %411 : vector<2x32xf32>
    %c6_115 = arith.constant 6 : index
    %c0_116 = arith.constant 0 : index
    %413 = vector.load %arg14[%c6_115, %c0_116] : memref<8x32xf32, #tpu.memory_space<vmem>>, vector<2x32xf32>
    tpu.vector_store %arg14[%c6_115, %c0_116], %412 {strides = array<i32>} : memref<8x32xf32, #tpu.memory_space<vmem>>, vector<2x32xf32>,
    %c0_117 = arith.constant 0 : index
    %c0_118 = arith.constant 0 : index
    %414 = vector.load %arg14[%c0_117, %c0_118] : memref<8x32xf32, #tpu.memory_space<vmem>>, vector<8x32xf32>
    %415 = arith.addf %210, %414 : vector<8x32xf32>
    %c0_119 = arith.constant 0 : index
    %c0_120 = arith.constant 0 : index
    %416 = vector.load %arg9[%c0_119, %c0_120] : memref<1x32xf32, #tpu.memory_space<vmem>>, vector<1x32xf32>
    %c0_121 = arith.constant 0 : index
    %c0_122 = arith.constant 0 : index
    %417 = vector.load %arg10[%c0_121, %c0_122] : memref<1x32xf32, #tpu.memory_space<vmem>>, vector<1x32xf32>
    %cst_123 = arith.constant dense<0.000000e+00> : vector<8xf32>
    %418 = vector.multi_reduction <add>, %415, %cst_123 [1] : vector<8x32xf32> to vector<8xf32>
    %419 = vector.shape_cast %418 : vector<8xf32> to vector<8x1xf32>
    %cst_124 = arith.constant 3.200000e+01 : f32
    %420 = vector.broadcast %cst_124 : f32 to vector<8x1xf32>
    %421 = arith.divf %419, %420 : vector<8x1xf32>
    %422 = vector.broadcast %421 : vector<8x1xf32> to vector<8x32xf32>
    %423 = arith.subf %415, %422 : vector<8x32xf32>
    %424 = arith.mulf %423, %423 : vector<8x32xf32>
    %cst_125 = arith.constant dense<0.000000e+00> : vector<8xf32>
    %425 = vector.multi_reduction <add>, %424, %cst_125 [1] : vector<8x32xf32> to vector<8xf32>
    %426 = vector.shape_cast %425 : vector<8xf32> to vector<8x1xf32>
    %cst_126 = arith.constant 3.200000e+01 : f32
    %427 = vector.broadcast %cst_126 : f32 to vector<8x1xf32>
    %428 = arith.divf %426, %427 : vector<8x1xf32>
    %429 = vector.broadcast %421 : vector<8x1xf32> to vector<8x32xf32>
    %430 = arith.subf %415, %429 : vector<8x32xf32>
    %cst_127 = arith.constant 9.99999974E-6 : f32
    %431 = vector.broadcast %cst_127 : f32 to vector<8x1xf32>
    %432 = arith.addf %428, %431 : vector<8x1xf32>
    %433 = math.rsqrt %432 : vector<8x1xf32>
    %434 = vector.broadcast %433 : vector<8x1xf32> to vector<8x32xf32>
    %435 = arith.mulf %430, %434 : vector<8x32xf32>
    %436 = vector.broadcast %416 : vector<1x32xf32> to vector<8x32xf32>
    %437 = arith.mulf %435, %436 : vector<8x32xf32>
    %438 = vector.broadcast %417 : vector<1x32xf32> to vector<8x32xf32>
    %439 = arith.addf %437, %438 : vector<8x32xf32>
    %c0_128 = arith.constant 0 : index
    %c0_129 = arith.constant 0 : index
    %440 = vector.load %arg11[%c0_128, %c0_129] : memref<32x4xf32, #tpu.memory_space<vmem>>, vector<32x4xf32>
    %cst_130 = arith.constant dense<0.000000e+00> : vector<8x4xf32>
    %441 = tpu.matmul %439, %440, %cst_130 {dimension_numbers = #tpu.dot_dimension_numbers<[1], [0], [0], [1], [0, 0, 1, 1], [], []>} : vector<8x32xf32>, vector<32x4xf32>, vector<8x4xf32> -> vector<8x4xf32>
    %c0_131 = arith.constant 0 : index
    %c0_132 = arith.constant 0 : index
    %442 = vector.load %arg12[%c0_131, %c0_132] : memref<1x4xf32, #tpu.memory_space<vmem>>, vector<1x4xf32>
    %443 = vector.broadcast %442 : vector<1x4xf32> to vector<8x4xf32>
    %444 = arith.addf %441, %443 : vector<8x4xf32>
    %c0_133 = arith.constant 0 : index
    %c0_134 = arith.constant 0 : index
    %445 = vector.load %arg13[%c0_133, %c0_134] : memref<8x4xf32, #tpu.memory_space<vmem>>, vector<8x4xf32>
    tpu.vector_store %arg13[%c0_133, %c0_134], %444 {strides = array<i32>} : memref<8x4xf32, #tpu.memory_space<vmem>>, vector<8x4xf32>,
    return
  }
  func.func @transform_0(%arg0: i32) -> (i32, i32) {
    %c0_i32 = arith.constant 0 : i32
    %c0_i32_0 = arith.constant 0 : i32
    %c0_i32_1 = arith.constant 0 : i32
    return %c0_i32, %c0_i32_0 : i32, i32
  }
  func.func @transform_1(%arg0: i32) -> (i32, i32) {
    %c0_i32 = arith.constant 0 : i32
    %c0_i32_0 = arith.constant 0 : i32
    %c0_i32_1 = arith.constant 0 : i32
    return %c0_i32, %c0_i32_0 : i32, i32
  }
  func.func @transform_2(%arg0: i32) -> (i32, i32) {
    %c0_i32 = arith.constant 0 : i32
    %c0_i32_0 = arith.constant 0 : i32
    %c0_i32_1 = arith.constant 0 : i32
    return %c0_i32, %c0_i32_0 : i32, i32
  }
  func.func @transform_3(%arg0: i32) -> (i32, i32, i32) {
    %c0_i32 = arith.constant 0 : i32
    %c0_i32_0 = arith.constant 0 : i32
    %c0_i32_1 = arith.constant 0 : i32
    %c0_i32_2 = arith.constant 0 : i32
    return %c0_i32, %c0_i32_0, %c0_i32_1 : i32, i32, i32
  }
  func.func @transform_4(%arg0: i32) -> (i32, i32, i32) {
    %c0_i32 = arith.constant 0 : i32
    %c0_i32_0 = arith.constant 0 : i32
    %c0_i32_1 = arith.constant 0 : i32
    %c0_i32_2 = arith.constant 0 : i32
    return %c0_i32, %c0_i32_0, %c0_i32_1 : i32, i32, i32
  }
  func.func @transform_5(%arg0: i32) -> (i32, i32, i32) {
    %c0_i32 = arith.constant 0 : i32
    %c0_i32_0 = arith.constant 0 : i32
    %c0_i32_1 = arith.constant 0 : i32
    %c0_i32_2 = arith.constant 0 : i32
    return %c0_i32, %c0_i32_0, %c0_i32_1 : i32, i32, i32
  }
  func.func @transform_6(%arg0: i32) -> (i32, i32, i32) {
    %c0_i32 = arith.constant 0 : i32
    %c0_i32_0 = arith.constant 0 : i32
    %c0_i32_1 = arith.constant 0 : i32
    %c0_i32_2 = arith.constant 0 : i32
    return %c0_i32, %c0_i32_0, %c0_i32_1 : i32, i32, i32
  }
  func.func @transform_7(%arg0: i32) -> (i32, i32, i32) {
    %c0_i32 = arith.constant 0 : i32
    %c0_i32_0 = arith.constant 0 : i32
    %c0_i32_1 = arith.constant 0 : i32
    %c0_i32_2 = arith.constant 0 : i32
    return %c0_i32, %c0_i32_0, %c0_i32_1 : i32, i32, i32
  }
  func.func @transform_8(%arg0: i32) -> (i32, i32) {
    %c0_i32 = arith.constant 0 : i32
    %c0_i32_0 = arith.constant 0 : i32
    %c0_i32_1 = arith.constant 0 : i32
    return %c0_i32, %c0_i32_0 : i32, i32
  }
  func.func @transform_9(%arg0: i32) -> (i32, i32) {
    %c0_i32 = arith.constant 0 : i32
    %c0_i32_0 = arith.constant 0 : i32
    %c0_i32_1 = arith.constant 0 : i32
    return %c0_i32, %c0_i32_0 : i32, i32
  }
  func.func @transform_10(%arg0: i32) -> (i32, i32) {
    %c0_i32 = arith.constant 0 : i32
    %c0_i32_0 = arith.constant 0 : i32
    %c0_i32_1 = arith.constant 0 : i32
    return %c0_i32, %c0_i32_0 : i32, i32
  }
  func.func @transform_11(%arg0: i32) -> (i32, i32) {
    %c0_i32 = arith.constant 0 : i32
    %c0_i32_0 = arith.constant 0 : i32
    %c0_i32_1 = arith.constant 0 : i32
    return %c0_i32, %c0_i32_0 : i32, i32
  }
  func.func @transform_12(%arg0: i32) -> (i32, i32) {
    %c0_i32 = arith.constant 0 : i32
    %c0_i32_0 = arith.constant 0 : i32
    %c0_i32_1 = arith.constant 0 : i32
    return %c0_i32, %c0_i32_0 : i32, i32
  }
}

</mosaic_0001>

<llo_original>
// kernel: model_forward.1
$region0: #{model_forward.1}
  #allocation0 [shape = 'u32[]', space=smem, size = 0x4, offset = 0x4, fixed_abs, tag = 'smem constant byte address 0x4 - core index']
  #allocation1 [shape = 'u32[144,128]{1,0:T(1,128)}', space=vmem, size = 0x12000, scoped, tag = 'internal scratch']
  #allocation2 [shape = 'f32[8,32]{1,0:T(8,128)}', space=vmem, size = 0x1000, scoped, tag = 'scratch operand']
  %s0 = inlined_call_operand.vmem [shape: f32[8,16], index: 0, kind: input, shape index: {}]
  %s1 = inlined_call_operand.vmem [shape: f32[16,32], index: 1, kind: input, shape index: {}]
  %s2 = inlined_call_operand.vmem [shape: f32[1,32], index: 2, kind: input, shape index: {}]
  %s3 = inlined_call_operand.vmem [shape: f32[2,1,32], index: 3, kind: input, shape index: {}]
  %s4 = inlined_call_operand.vmem [shape: f32[2,1,32], index: 4, kind: input, shape index: {}]
  %s5 = inlined_call_operand.vmem [shape: f32[2,32,128], index: 5, kind: input, shape index: {}]
  %s6 = inlined_call_operand.hbm [shape: f32[2,32,128], index: 6, kind: input, shape index: {}]
  %s7 = inlined_call_operand.vmem [shape: f32[2,1,128], index: 7, kind: input, shape index: {}]
  %s8 = inlined_call_operand.vmem [shape: f32[1,32], index: 8, kind: input, shape index: {}]
  %s9 = inlined_call_operand.vmem [shape: f32[1,32], index: 9, kind: input, shape index: {}]
  %s10 = inlined_call_operand.vmem [shape: f32[32,4], index: 10, kind: input, shape index: {}]
  %s11 = inlined_call_operand.hbm [shape: f32[1,4], index: 11, kind: input, shape index: {}]
  %s12 = inlined_call_operand.vmem [shape: f32[8,4], index: 12, kind: output, shape index: {}]
  %s13 = sld [smem:[#allocation0]]
  $region66: #{model_forward.1} parent=0
    _
  %s15 = ssub.s32 1, %s13
  %s16 = scalar_select 0, %s15, %s13
  $region1: #{model_forward.1} parent=0
    #allocation3 [shape = 'u8[32768]{0}', space=vmem, size = 0x8000, scoped, tag = 'input window, operand 6, single buffered']
    #allocation4 [shape = 's32[1]{0}', space=sflag, size = 0x4, scoped, tag = 'scoped memory for model_forward.1']
    #allocation5 [shape = 'u8[512]{0}', space=vmem, size = 0x400, scoped, tag = 'input window, operand 11, single buffered']
    #allocation6 [shape = 's32[1]{0}', space=sflag, size = 0x4, scoped, tag = 'scoped memory for model_forward.1']
    %17 = vsyncpa [#allocation4], 0
    %18 = vsyncpa [#allocation6], 0
    // Predicated region
    $region2: #{model_forward.1} parent=1 // pred_check
      _
    $region3: #{model_forward.1} parent=1 // pred_check_branch
      %20 = sbr.rel (0) target = $region5
    $region4: #{model_forward.1} parent=1 // pred_region
      _
    $region5: #{model_forward.1} parent=1 // pred_fallthru
      _
    // Predicated region
    $region6: #{model_forward.1} parent=1 // pred_check
      _
    $region7: #{model_forward.1} parent=1 // pred_check_branch
      %22 = sbr.rel (0) target = $region9
    $region8: #{model_forward.1} parent=1 // pred_region
      _
    $region9: #{model_forward.1} parent=1 // pred_fallthru
      _
    // Predicated region
    $region10: #{model_forward.1} parent=1 // pred_check
      _
    $region11: #{model_forward.1} parent=1 // pred_check_branch
      %24 = sbr.rel (0) target = $region13
    $region12: #{model_forward.1} parent=1 // pred_region
      _
    $region13: #{model_forward.1} parent=1 // pred_fallthru
      _
    // Predicated region
    $region14: #{model_forward.1} parent=1 // pred_check
      _
    $region15: #{model_forward.1} parent=1 // pred_check_branch
      %26 = sbr.rel (0) target = $region17
    $region16: #{model_forward.1} parent=1 // pred_region
      _
    $region17: #{model_forward.1} parent=1 // pred_fallthru
      _
    // Predicated region
    $region18: #{model_forward.1} parent=1 // pred_check
      _
    $region19: #{model_forward.1} parent=1 // pred_check_branch
      %28 = sbr.rel (0) target = $region21
    $region20: #{model_forward.1} parent=1 // pred_region
      _
    $region21: #{model_forward.1} parent=1 // pred_fallthru
      _
    // Predicated region
    $region22: #{model_forward.1} parent=1 // pred_check
      _
    $region23: #{model_forward.1} parent=1 // pred_check_branch
      %30 = sbr.rel (0) target = $region25
    $region24: #{model_forward.1} parent=1 // pred_region
      _
    $region25: #{model_forward.1} parent=1 // pred_fallthru
      _
    // Predicated region
    $region26: #{model_forward.1} parent=1 // pred_check
      _
    $region27: #{model_forward.1} parent=1 // pred_check_branch
      %32 = sbr.rel (0) target = $region29
    $region28: #{model_forward.1} parent=1 // pred_region
      %s34 = ssub.s32 1024, 1024
      %35 = vsyncadd [#allocation4], %s34
      %s36 = sshll.u32 [#allocation3], 4
      %s37 = int_to_ptr.vmem [resolvable:$true] %s36
      %42 = dma.hbm_to_vmem [thread:$0]  %s6, 1024, %s37, [#allocation4], 128, 128, 8
    $region29: #{model_forward.1} parent=1 // pred_fallthru
      _
    // Predicated region
    $region30: #{model_forward.1} parent=1 // pred_check
      _
    $region31: #{model_forward.1} parent=1 // pred_check_branch
      %44 = sbr.rel (0) target = $region33
    $region32: #{model_forward.1} parent=1 // pred_region
      _
    $region33: #{model_forward.1} parent=1 // pred_fallthru
      _
    // Predicated region
    $region34: #{model_forward.1} parent=1 // pred_check
      _
    $region35: #{model_forward.1} parent=1 // pred_check_branch
      %46 = sbr.rel (0) target = $region37
    $region36: #{model_forward.1} parent=1 // pred_region
      _
    $region37: #{model_forward.1} parent=1 // pred_fallthru
      _
    // Predicated region
    $region38: #{model_forward.1} parent=1 // pred_check
      _
    $region39: #{model_forward.1} parent=1 // pred_check_branch
      %48 = sbr.rel (0) target = $region41
    $region40: #{model_forward.1} parent=1 // pred_region
      _
    $region41: #{model_forward.1} parent=1 // pred_fallthru
      _
    // Predicated region
    $region42: #{model_forward.1} parent=1 // pred_check
      _
    $region43: #{model_forward.1} parent=1 // pred_check_branch
      %50 = sbr.rel (0) target = $region45
    $region44: #{model_forward.1} parent=1 // pred_region
      _
    $region45: #{model_forward.1} parent=1 // pred_fallthru
      _
    // Predicated region
    $region46: #{model_forward.1} parent=1 // pred_check
      _
    $region47: #{model_forward.1} parent=1 // pred_check_branch
      %52 = sbr.rel (0) target = $region49
    $region48: #{model_forward.1} parent=1 // pred_region
      %s54 = ssub.s32 16, 16
      %55 = vsyncadd [#allocation6], %s54
      %s57 = sshll.u32 [#allocation5], 4
      %s58 = int_to_ptr.vmem [resolvable:$true] %s57
      %60 = dma.hbm_to_vmem [thread:$0]  %s11, 16, %s58, [#allocation6]
    $region49: #{model_forward.1} parent=1 // pred_fallthru
      _
    // Predicated region
    $region50: #{model_forward.1} parent=1 // pred_check
      _
    $region51: #{model_forward.1} parent=1 // pred_check_branch
      %62 = sbr.rel (0) target = $region53
    $region52: #{model_forward.1} parent=1 // pred_region
      %63 = dma.done [#allocation4], 1024
    $region53: #{model_forward.1} parent=1 // pred_fallthru
      _
    // Predicated region
    $region54: #{model_forward.1} parent=1 // pred_check
      _
    $region55: #{model_forward.1} parent=1 // pred_check_branch
      %65 = sbr.rel (0) target = $region57
    $region56: #{model_forward.1} parent=1 // pred_region
      %66 = dma.done [#allocation6], 16
    $region57: #{model_forward.1} parent=1 // pred_fallthru
      _
    %v67 = vld [vmem:[%s0] sm:$0xff]
    %v68 = vld [vmem:[%s1] sm:$0xff]
    %v69 = vld [vmem:[%s1 + $0x8] sm:$0xff]
    %v70 = vld [vmem:[%s2] sm:$0x1]
    %v72 = vlaneseq
    %v73 = vshrl.u32 %v72, 7
    %v74 = vsub.s32 0, %v73
    %v75 = vrot.slane %v70, %v74
    %vm77 = vcmask 130048
    %v79 = vsel %vm77, %v67, 0
    %81 = vmatprep.subr.mxu0 0.0
    %82 = vmatpush1.msra.mxu0 %v68
    %83 = vmatprep.subr.mxu0 0.0
    %84 = vmatpush1.msra.mxu0 %v69
    %85 = vmatprep.subr.mxu0 0.0
    %86 = vmatpush1.msra.mxu0 0.0
    %87 = vmatprep.subr.mxu0 0.0
    %88 = vmatpush1.msra.mxu0 0.0
    %89 = vmatprep.subr.mxu0 0.0
    %90 = vmatpush1.msra.mxu0 0.0
    %91 = vmatprep.subr.mxu0 0.0
    %92 = vmatpush1.msra.mxu0 0.0
    %93 = vmatprep.subr.mxu0 0.0
    %94 = vmatpush1.msra.mxu0 0.0
    %95 = vmatprep.subr.mxu0 0.0
    %96 = vmatpush1.msra.mxu0 0.0
    %97 = vmatprep.subr.mxu0 0.0
    %98 = vmatpush1.msra.mxu0 0.0
    %99 = vmatprep.subr.mxu0 0.0
    %100 = vmatpush1.msra.mxu0 0.0
    %101 = vmatprep.subr.mxu0 0.0
    %102 = vmatpush1.msra.mxu0 0.0
    %103 = vmatprep.subr.mxu0 0.0
    %104 = vmatpush1.msra.mxu0 0.0
    %105 = vmatprep.subr.mxu0 0.0
    %106 = vmatpush1.msra.mxu0 0.0
    %107 = vmatprep.subr.mxu0 0.0
    %108 = vmatpush1.msra.mxu0 0.0
    %109 = vmatprep.subr.mxu0 0.0
    %110 = vmatpush1.msra.mxu0 0.0
    %111 = vmatprep.subr.mxu0 0.0
    %112 = vmatpush1.msra.mxu0 0.0
    %113 = vmatprep.subr.mxu0 0.0
    %114 = vmatpush1.msra.mxu0 0.0
    %115 = vmatprep.subr.mxu0 0.0
    %116 = vmatpush1.msra.mxu0 0.0
    %117 = vmatprep.subr.mxu0 0.0
    %118 = vmatpush1.msra.mxu0 0.0
    %119 = vmatprep.subr.mxu0 0.0
    %120 = vmatpush1.msra.mxu0 0.0
    %121 = vmatprep.subr.mxu0 0.0
    %122 = vmatpush1.msra.mxu0 0.0
    %123 = vmatprep.subr.mxu0 0.0
    %124 = vmatpush1.msra.mxu0 0.0
    %125 = vmatprep.subr.mxu0 0.0
    %126 = vmatpush1.msra.mxu0 0.0
    %127 = vmatprep.subr.mxu0 0.0
    %128 = vmatpush1.msra.mxu0 0.0
    %129 = vmatprep.subr.mxu0 0.0
    %130 = vmatpush1.msra.mxu0 0.0
    %131 = vmatprep.subr.mxu0 0.0
    %132 = vmatpush1.msra.mxu0 0.0
    %133 = vmatprep.subr.mxu0 0.0
    %134 = vmatpush1.msra.mxu0 0.0
    %135 = vmatprep.subr.mxu0 0.0
    %136 = vmatpush1.msra.mxu0 0.0
    %137 = vmatprep.subr.mxu0 0.0
    %138 = vmatpush1.msra.mxu0 0.0
    %139 = vmatprep.subr.mxu0 0.0
    %140 = vmatpush1.msra.mxu0 0.0
    %141 = vmatprep.subr.mxu0 0.0
    %142 = vmatpush1.msra.mxu0 0.0
    %143 = vmatprep.subr.mxu0 0.0
    %144 = vmatpush1.msra.mxu0 0.0
    %145 = vmatprep.mubr.f32.mxu0 0.0
    %146 = vmatmul.mubr.f32.gmra.mrb[0].mxu0 %v79
    %v147 = vpop.f32.mrb[0].mxu0
    %v148 = vadd.f32 %v75, %v147
    %v149 = vpop.f32.mrb[0].mxu0
    %150 = vdwg.mxu0
    %v151 = vld [vmem:[%s3] sm:$0x1]
    %v152 = vld [vmem:[%s4] sm:$0x1]
    %vm153 = vcmask 261120
    %v154 = vsel %vm153, %v148, 0.0
    %155 = vadd.xlane.f32.xlu0 %v154
    %v156 = vpop.xlane.xlu0 %155
    %v157 = vrcp.pop 32.0
    %v158 = vmul.f32 %v156, %v157
    %v159 = vsub.f32 %v148, %v158
    %v160 = vmul.f32 %v159, %v159
    %v161 = vsel %vm153, %v160, 0.0
    %162 = vadd.xlane.f32.xlu0 %v161
    %v163 = vpop.xlane.xlu0 %162
    %v164 = vmul.f32 %v163, %v157
    %v165 = vadd.f32 %v164, 1e-05
    %v166 = vrsqrt.pop %v165
    %v167 = vmul.f32 %v159, %v166
    %v169 = vlaneseq
    %v170 = vshrl.u32 %v169, 7
    %v171 = vsub.s32 0, %v170
    %v172 = vrot.slane %v151, %v171
    %v174 = vmul.f32 %v167, %v172
    %v176 = vlaneseq
    %v177 = vshrl.u32 %v176, 7
    %v178 = vsub.s32 0, %v177
    %v179 = vrot.slane %v152, %v178
    %v181 = vadd.f32 %v174, %v179
    %v182 = vld [vmem:[%s5] sm:$0xff]
    %v183 = vld [vmem:[%s5 + $0x8] sm:$0xff]
    %v184 = vld [vmem:[%s5 + $0x10] sm:$0xff]
    %v185 = vld [vmem:[%s5 + $0x18] sm:$0xff]
    %v186 = vld [vmem:[%s7] sm:$0x1]
    %v188 = vlaneseq
    %v189 = vshrl.u32 %v188, 7
    %v190 = vsub.s32 0, %v189
    %v191 = vrot.slane %v186, %v190
    %v194 = vsel %vm153, %v181, 0
    %196 = vmatprep.subr.mxu0 0.0
    %197 = vmatpush1.msra.mxu0 %v182
    %198 = vmatprep.subr.mxu0 0.0
    %199 = vmatpush1.msra.mxu0 %v183
    %200 = vmatprep.subr.mxu0 0.0
    %201 = vmatpush1.msra.mxu0 %v184
    %202 = vmatprep.subr.mxu0 0.0
    %203 = vmatpush1.msra.mxu0 %v185
    %204 = vmatprep.subr.mxu0 0.0
    %205 = vmatpush1.msra.mxu0 0.0
    %206 = vmatprep.subr.mxu0 0.0
    %207 = vmatpush1.msra.mxu0 0.0
    %208 = vmatprep.subr.mxu0 0.0
    %209 = vmatpush1.msra.mxu0 0.0
    %210 = vmatprep.subr.mxu0 0.0
    %211 = vmatpush1.msra.mxu0 0.0
    %212 = vmatprep.subr.mxu0 0.0
    %213 = vmatpush1.msra.mxu0 0.0
    %214 = vmatprep.subr.mxu0 0.0
    %215 = vmatpush1.msra.mxu0 0.0
    %216 = vmatprep.subr.mxu0 0.0
    %217 = vmatpush1.msra.mxu0 0.0
    %218 = vmatprep.subr.mxu0 0.0
    %219 = vmatpush1.msra.mxu0 0.0
    %220 = vmatprep.subr.mxu0 0.0
    %221 = vmatpush1.msra.mxu0 0.0
    %222 = vmatprep.subr.mxu0 0.0
    %223 = vmatpush1.msra.mxu0 0.0
    %224 = vmatprep.subr.mxu0 0.0
    %225 = vmatpush1.msra.mxu0 0.0
    %226 = vmatprep.subr.mxu0 0.0
    %227 = vmatpush1.msra.mxu0 0.0
    %228 = vmatprep.subr.mxu0 0.0
    %229 = vmatpush1.msra.mxu0 0.0
    %230 = vmatprep.subr.mxu0 0.0
    %231 = vmatpush1.msra.mxu0 0.0
    %232 = vmatprep.subr.mxu0 0.0
    %233 = vmatpush1.msra.mxu0 0.0
    %234 = vmatprep.subr.mxu0 0.0
    %235 = vmatpush1.msra.mxu0 0.0
    %236 = vmatprep.subr.mxu0 0.0
    %237 = vmatpush1.msra.mxu0 0.0
    %238 = vmatprep.subr.mxu0 0.0
    %239 = vmatpush1.msra.mxu0 0.0
    %240 = vmatprep.subr.mxu0 0.0
    %241 = vmatpush1.msra.mxu0 0.0
    %242 = vmatprep.subr.mxu0 0.0
    %243 = vmatpush1.msra.mxu0 0.0
    %244 = vmatprep.subr.mxu0 0.0
    %245 = vmatpush1.msra.mxu0 0.0
    %246 = vmatprep.subr.mxu0 0.0
    %247 = vmatpush1.msra.mxu0 0.0
    %248 = vmatprep.subr.mxu0 0.0
    %249 = vmatpush1.msra.mxu0 0.0
    %250 = vmatprep.subr.mxu0 0.0
    %251 = vmatpush1.msra.mxu0 0.0
    %252 = vmatprep.subr.mxu0 0.0
    %253 = vmatpush1.msra.mxu0 0.0
    %254 = vmatprep.subr.mxu0 0.0
    %255 = vmatpush1.msra.mxu0 0.0
    %256 = vmatprep.subr.mxu0 0.0
    %257 = vmatpush1.msra.mxu0 0.0
    %258 = vmatprep.subr.mxu0 0.0
    %259 = vmatpush1.msra.mxu0 0.0
    %260 = vmatprep.mubr.f32.mxu0 0.0
    %261 = vmatmul.mubr.f32.gmra.mrb[0].mxu0 %v194
    %v262 = vpop.f32.mrb[0].mxu0
    %v263 = vadd.f32 %v191, %v262
    %v264 = vpop.f32.mrb[0].mxu0
    %265 = vdwg.mxu0
    %v266 = vld [vmem:[#allocation3] sm:$0xff]
    %v267 = vld [vmem:[#allocation3 + $0x8] sm:$0xff]
    %v268 = vld [vmem:[#allocation3 + $0x10] sm:$0xff]
    %v269 = vld [vmem:[#allocation3 + $0x18] sm:$0xff]
    %v271 = vsel %vm153, 0.0, 0
    %273 = vmatprep.subr.mxu0 0.0
    %274 = vmatpush1.msra.mxu0 %v266
    %275 = vmatprep.subr.mxu0 0.0
    %276 = vmatpush1.msra.mxu0 %v267
    %277 = vmatprep.subr.mxu0 0.0
    %278 = vmatpush1.msra.mxu0 %v268
    %279 = vmatprep.subr.mxu0 0.0
    %280 = vmatpush1.msra.mxu0 %v269
    %281 = vmatprep.subr.mxu0 0.0
    %282 = vmatpush1.msra.mxu0 0.0
    %283 = vmatprep.subr.mxu0 0.0
    %284 = vmatpush1.msra.mxu0 0.0
    %285 = vmatprep.subr.mxu0 0.0
    %286 = vmatpush1.msra.mxu0 0.0
    %287 = vmatprep.subr.mxu0 0.0
    %288 = vmatpush1.msra.mxu0 0.0
    %289 = vmatprep.subr.mxu0 0.0
    %290 = vmatpush1.msra.mxu0 0.0
    %291 = vmatprep.subr.mxu0 0.0
    %292 = vmatpush1.msra.mxu0 0.0
    %293 = vmatprep.subr.mxu0 0.0
    %294 = vmatpush1.msra.mxu0 0.0
    %295 = vmatprep.subr.mxu0 0.0
    %296 = vmatpush1.msra.mxu0 0.0
    %297 = vmatprep.subr.mxu0 0.0
    %298 = vmatpush1.msra.mxu0 0.0
    %299 = vmatprep.subr.mxu0 0.0
    %300 = vmatpush1.msra.mxu0 0.0
    %301 = vmatprep.subr.mxu0 0.0
    %302 = vmatpush1.msra.mxu0 0.0
    %303 = vmatprep.subr.mxu0 0.0
    %304 = vmatpush1.msra.mxu0 0.0
    %305 = vmatprep.subr.mxu0 0.0
    %306 = vmatpush1.msra.mxu0 0.0
    %307 = vmatprep.subr.mxu0 0.0
    %308 = vmatpush1.msra.mxu0 0.0
    %309 = vmatprep.subr.mxu0 0.0
    %310 = vmatpush1.msra.mxu0 0.0
    %311 = vmatprep.subr.mxu0 0.0
    %312 = vmatpush1.msra.mxu0 0.0
    %313 = vmatprep.subr.mxu0 0.0
    %314 = vmatpush1.msra.mxu0 0.0
    %315 = vmatprep.subr.mxu0 0.0
    %316 = vmatpush1.msra.mxu0 0.0
    %317 = vmatprep.subr.mxu0 0.0
    %318 = vmatpush1.msra.mxu0 0.0
    %319 = vmatprep.subr.mxu0 0.0
    %320 = vmatpush1.msra.mxu0 0.0
    %321 = vmatprep.subr.mxu0 0.0
    %322 = vmatpush1.msra.mxu0 0.0
    %323 = vmatprep.subr.mxu0 0.0
    %324 = vmatpush1.msra.mxu0 0.0
    %325 = vmatprep.subr.mxu0 0.0
    %326 = vmatpush1.msra.mxu0 0.0
    %327 = vmatprep.subr.mxu0 0.0
    %328 = vmatpush1.msra.mxu0 0.0
    %329 = vmatprep.subr.mxu0 0.0
    %330 = vmatpush1.msra.mxu0 0.0
    %331 = vmatprep.subr.mxu0 0.0
    %332 = vmatpush1.msra.mxu0 0.0
    %333 = vmatprep.subr.mxu0 0.0
    %334 = vmatpush1.msra.mxu0 0.0
    %335 = vmatprep.subr.mxu0 0.0
    %336 = vmatpush1.msra.mxu0 0.0
    %337 = vmatprep.mubr.f32.mxu0 0.0
    %338 = vmatmul.mubr.f32.gmra.mrb[0].mxu0 %v271
    %v339 = vpop.f32.mrb[0].mxu0
    %v340 = vadd.f32 0.0, %v339
    %v341 = vpop.f32.mrb[0].mxu0
    %342 = vdwg.mxu0
    %v343 = vadd.f32 %v263, %v340
    %v344 = vmin.f32 %v343, 0.0
    %v345 = vand.u32 2147483647, %v343
    %v346 = vsub.f32 0.0, %v345
    %v347 = vmul.f32 %v346, 1.442695
    %v348 = vpow.pop %v347
    %v349 = vadd.f32 %v348, 1.0
    %v350 = vlog2.pop %v349
    %v351 = vmul.f32 %v350, 0.6931472
    %v352 = vsub.f32 %v344, %v351
    %v353 = vadd.f32 %v352, 0.0
    %355 = vrot.lane.b32.xlu0 %v343, 32
    %v356 = vpop.permute.xlu0 %355
    %v358 = vmax.f32 %v353, %v356
    %360 = vrot.lane.b32.xlu0 %v358, 96
    %v361 = vpop.permute.xlu0 %360
    %v363 = vsub.f32 %v343, %v361
    %v364 = vmul.f32 %v363, 1.442695
    %v365 = vpow.pop %v364
    %v366 = vsub.f32 %v353, %v358
    %v367 = vmul.f32 %v366, 1.442695
    %v368 = vpow.pop %v367
    %v369 = vtanh.pop %v343
    %v370 = vxor.u32 %v343, 2147483648
    %v371 = vmul.f32 %v370, 1.442695
    %v372 = vpow.pop %v371
    %v373 = vadd.f32 %v372, 1.0
    %v374 = vrcp.pop %v373
    %v375 = vmul.f32 1.0, %v374
    %v376 = vmul.f32 %v368, 0.0
    %378 = vrot.lane.b32.xlu0 %v369, 64
    %v379 = vpop.permute.xlu0 %378
    %v381 = vmul.f32 %v365, %v379
    %383 = vrot.lane.b32.xlu0 %v381, 32
    %v384 = vpop.permute.xlu0 %383
    %v386 = vadd.f32 %v376, %v384
    %388 = vrot.lane.b32.xlu0 %v365, 32
    %v389 = vpop.permute.xlu0 %388
    %v391 = vadd.f32 %v376, %v389
    %393 = vrot.lane.b32.xlu0 %v386, 64
    %v394 = vpop.permute.xlu0 %393
    %v396 = vmul.f32 %v375, %v394
    %v397 = vmax.f32 %v391, 1.0
    %v398 = vrcp.pop %v397
    %400 = vrot.lane.b32.xlu0 %v398, 64
    %v401 = vpop.permute.xlu0 %400
    %v403 = vmul.f32 %v396, %v401
    %405 = vrot.lane.b32.xlu0 %v403, 32
    %v406 = vpop.permute.xlu0 %405
    %vm408 = vcmask 254976
    %409 = vst.msk [vmem:[#allocation2] sm:$0x3] %vm408, %v406
    %v410 = vsel %vm153, %v406, 0
    %412 = vmatprep.subr.mxu0 0.0
    %413 = vmatpush1.msra.mxu0 %v266
    %414 = vmatprep.subr.mxu0 0.0
    %415 = vmatpush1.msra.mxu0 %v267
    %416 = vmatprep.subr.mxu0 0.0
    %417 = vmatpush1.msra.mxu0 %v268
    %418 = vmatprep.subr.mxu0 0.0
    %419 = vmatpush1.msra.mxu0 %v269
    %420 = vmatprep.subr.mxu0 0.0
    %421 = vmatpush1.msra.mxu0 0.0
    %422 = vmatprep.subr.mxu0 0.0
    %423 = vmatpush1.msra.mxu0 0.0
    %424 = vmatprep.subr.mxu0 0.0
    %425 = vmatpush1.msra.mxu0 0.0
    %426 = vmatprep.subr.mxu0 0.0
    %427 = vmatpush1.msra.mxu0 0.0
    %428 = vmatprep.subr.mxu0 0.0
    %429 = vmatpush1.msra.mxu0 0.0
    %430 = vmatprep.subr.mxu0 0.0
    %431 = vmatpush1.msra.mxu0 0.0
    %432 = vmatprep.subr.mxu0 0.0
    %433 = vmatpush1.msra.mxu0 0.0
    %434 = vmatprep.subr.mxu0 0.0
    %435 = vmatpush1.msra.mxu0 0.0
    %436 = vmatprep.subr.mxu0 0.0
    %437 = vmatpush1.msra.mxu0 0.0
    %438 = vmatprep.subr.mxu0 0.0
    %439 = vmatpush1.msra.mxu0 0.0
    %440 = vmatprep.subr.mxu0 0.0
    %441 = vmatpush1.msra.mxu0 0.0
    %442 = vmatprep.subr.mxu0 0.0
    %443 = vmatpush1.msra.mxu0 0.0
    %444 = vmatprep.subr.mxu0 0.0
    %445 = vmatpush1.msra.mxu0 0.0
    %446 = vmatprep.subr.mxu0 0.0
    %447 = vmatpush1.msra.mxu0 0.0
    %448 = vmatprep.subr.mxu0 0.0
    %449 = vmatpush1.msra.mxu0 0.0
    %450 = vmatprep.subr.mxu0 0.0
    %451 = vmatpush1.msra.mxu0 0.0
    %452 = vmatprep.subr.mxu0 0.0
    %453 = vmatpush1.msra.mxu0 0.0
    %454 = vmatprep.subr.mxu0 0.0
    %455 = vmatpush1.msra.mxu0 0.0
    %456 = vmatprep.subr.mxu0 0.0
    %457 = vmatpush1.msra.mxu0 0.0
    %458 = vmatprep.subr.mxu0 0.0
    %459 = vmatpush1.msra.mxu0 0.0
    %460 = vmatprep.subr.mxu0 0.0
    %461 = vmatpush1.msra.mxu0 0.0
    %462 = vmatprep.subr.mxu0 0.0
    %463 = vmatpush1.msra.mxu0 0.0
    %464 = vmatprep.subr.mxu0 0.0
    %465 = vmatpush1.msra.mxu0 0.0
    %466 = vmatprep.subr.mxu0 0.0
    %467 = vmatpush1.msra.mxu0 0.0
    %468 = vmatprep.subr.mxu0 0.0
    %469 = vmatpush1.msra.mxu0 0.0
    %470 = vmatprep.subr.mxu0 0.0
    %471 = vmatpush1.msra.mxu0 0.0
    %472 = vmatprep.subr.mxu0 0.0
    %473 = vmatpush1.msra.mxu0 0.0
    %474 = vmatprep.subr.mxu0 0.0
    %475 = vmatpush1.msra.mxu0 0.0
    %476 = vmatprep.mubr.f32.mxu0 0.0
    %477 = vmatmul.mubr.f32.gmra.mrb[0].mxu0 %v410
    %v478 = vpop.f32.mrb[0].mxu0
    %v479 = vadd.f32 0.0, %v478
    %v480 = vpop.f32.mrb[0].mxu0
    %481 = vdwg.mxu0
    %v483 = vrot.slane %v479, 6
    %v485 = vadd.f32 %v263, %v483
    %v486 = vmin.f32 %v485, 0.0
    %v487 = vand.u32 2147483647, %v485
    %v488 = vsub.f32 0.0, %v487
    %v489 = vmul.f32 %v488, 1.442695
    %v490 = vpow.pop %v489
    %v491 = vadd.f32 %v490, 1.0
    %v492 = vlog2.pop %v491
    %v493 = vmul.f32 %v492, 0.6931472
    %v494 = vsub.f32 %v486, %v493
    %v495 = vrot.slane %v358, 6
    %v497 = vadd.f32 %v494, %v495
    %499 = vrot.lane.b32.xlu0 %v485, 32
    %v500 = vpop.permute.xlu0 %499
    %v502 = vmax.f32 %v497, %v500
    %504 = vrot.lane.b32.xlu0 %v502, 96
    %v505 = vpop.permute.xlu0 %504
    %v507 = vsub.f32 %v485, %v505
    %v508 = vmul.f32 %v507, 1.442695
    %v509 = vpow.pop %v508
    %v510 = vsub.f32 %v497, %v502
    %v511 = vmul.f32 %v510, 1.442695
    %v512 = vpow.pop %v511
    %v513 = vtanh.pop %v485
    %v514 = vxor.u32 %v485, 2147483648
    %v515 = vmul.f32 %v514, 1.442695
    %v516 = vpow.pop %v515
    %v517 = vadd.f32 %v516, 1.0
    %v518 = vrcp.pop %v517
    %v519 = vmul.f32 1.0, %v518
    %v520 = vrot.slane %v386, 6
    %v522 = vmul.f32 %v512, %v520
    %524 = vrot.lane.b32.xlu0 %v513, 64
    %v525 = vpop.permute.xlu0 %524
    %v527 = vmul.f32 %v509, %v525
    %529 = vrot.lane.b32.xlu0 %v527, 32
    %v530 = vpop.permute.xlu0 %529
    %v532 = vadd.f32 %v522, %v530
    %v534 = vrot.slane %v391, 6
    %v536 = vmul.f32 %v512, %v534
    %538 = vrot.lane.b32.xlu0 %v509, 32
    %v539 = vpop.permute.xlu0 %538
    %v541 = vadd.f32 %v536, %v539
    %543 = vrot.lane.b32.xlu0 %v532, 64
    %v544 = vpop.permute.xlu0 %543
    %v546 = vmul.f32 %v519, %v544
    %v547 = vmax.f32 %v541, 1.0
    %v548 = vrcp.pop %v547
    %550 = vrot.lane.b32.xlu0 %v548, 64
    %v551 = vpop.permute.xlu0 %550
    %v553 = vmul.f32 %v546, %v551
    %555 = vrot.lane.b32.xlu0 %v553, 32
    %v556 = vpop.permute.xlu0 %555
    %vm558 = vcmask 257026
    %559 = vst.msk [vmem:[#allocation2] sm:$0xc] %vm558, %v556
    %v560 = vrot.slane %v553, 2
    %561 = vrot.lane.b32.xlu0 %v560, 32
    %v562 = vpop.permute.xlu0 %561
    %v563 = vsel %vm153, %v562, 0
    %565 = vmatprep.subr.mxu0 0.0
    %566 = vmatpush1.msra.mxu0 %v266
    %567 = vmatprep.subr.mxu0 0.0
    %568 = vmatpush1.msra.mxu0 %v267
    %569 = vmatprep.subr.mxu0 0.0
    %570 = vmatpush1.msra.mxu0 %v268
    %571 = vmatprep.subr.mxu0 0.0
    %572 = vmatpush1.msra.mxu0 %v269
    %573 = vmatprep.subr.mxu0 0.0
    %574 = vmatpush1.msra.mxu0 0.0
    %575 = vmatprep.subr.mxu0 0.0
    %576 = vmatpush1.msra.mxu0 0.0
    %577 = vmatprep.subr.mxu0 0.0
    %578 = vmatpush1.msra.mxu0 0.0
    %579 = vmatprep.subr.mxu0 0.0
    %580 = vmatpush1.msra.mxu0 0.0
    %581 = vmatprep.subr.mxu0 0.0
    %582 = vmatpush1.msra.mxu0 0.0
    %583 = vmatprep.subr.mxu0 0.0
    %584 = vmatpush1.msra.mxu0 0.0
    %585 = vmatprep.subr.mxu0 0.0
    %586 = vmatpush1.msra.mxu0 0.0
    %587 = vmatprep.subr.mxu0 0.0
    %588 = vmatpush1.msra.mxu0 0.0
    %589 = vmatprep.subr.mxu0 0.0
    %590 = vmatpush1.msra.mxu0 0.0
    %591 = vmatprep.subr.mxu0 0.0
    %592 = vmatpush1.msra.mxu0 0.0
    %593 = vmatprep.subr.mxu0 0.0
    %594 = vmatpush1.msra.mxu0 0.0
    %595 = vmatprep.subr.mxu0 0.0
    %596 = vmatpush1.msra.mxu0 0.0
    %597 = vmatprep.subr.mxu0 0.0
    %598 = vmatpush1.msra.mxu0 0.0
    %599 = vmatprep.subr.mxu0 0.0
    %600 = vmatpush1.msra.mxu0 0.0
    %601 = vmatprep.subr.mxu0 0.0
    %602 = vmatpush1.msra.mxu0 0.0
    %603 = vmatprep.subr.mxu0 0.0
    %604 = vmatpush1.msra.mxu0 0.0
    %605 = vmatprep.subr.mxu0 0.0
    %606 = vmatpush1.msra.mxu0 0.0
    %607 = vmatprep.subr.mxu0 0.0
    %608 = vmatpush1.msra.mxu0 0.0
    %609 = vmatprep.subr.mxu0 0.0
    %610 = vmatpush1.msra.mxu0 0.0
    %611 = vmatprep.subr.mxu0 0.0
    %612 = vmatpush1.msra.mxu0 0.0
    %613 = vmatprep.subr.mxu0 0.0
    %614 = vmatpush1.msra.mxu0 0.0
    %615 = vmatprep.subr.mxu0 0.0
    %616 = vmatpush1.msra.mxu0 0.0
    %617 = vmatprep.subr.mxu0 0.0
    %618 = vmatpush1.msra.mxu0 0.0
    %619 = vmatprep.subr.mxu0 0.0
    %620 = vmatpush1.msra.mxu0 0.0
    %621 = vmatprep.subr.mxu0 0.0
    %622 = vmatpush1.msra.mxu0 0.0
    %623 = vmatprep.subr.mxu0 0.0
    %624 = vmatpush1.msra.mxu0 0.0
    %625 = vmatprep.subr.mxu0 0.0
    %626 = vmatpush1.msra.mxu0 0.0
    %627 = vmatprep.subr.mxu0 0.0
    %628 = vmatpush1.msra.mxu0 0.0
    %629 = vmatprep.mubr.f32.mxu0 0.0
    %630 = vmatmul.mubr.f32.gmra.mrb[0].mxu0 %v563
    %v631 = vpop.f32.mrb[0].mxu0
    %v632 = vadd.f32 0.0, %v631
    %v633 = vpop.f32.mrb[0].mxu0
    %634 = vdwg.mxu0
    %v636 = vrot.slane %v632, 4
    %v638 = vadd.f32 %v263, %v636
    %v639 = vmin.f32 %v638, 0.0
    %v640 = vand.u32 2147483647, %v638
    %v641 = vsub.f32 0.0, %v640
    %v642 = vmul.f32 %v641, 1.442695
    %v643 = vpow.pop %v642
    %v644 = vadd.f32 %v643, 1.0
    %v645 = vlog2.pop %v644
    %v646 = vmul.f32 %v645, 0.6931472
    %v647 = vsub.f32 %v639, %v646
    %v648 = vrot.slane %v502, 6
    %v650 = vadd.f32 %v647, %v648
    %652 = vrot.lane.b32.xlu0 %v638, 32
    %v653 = vpop.permute.xlu0 %652
    %v655 = vmax.f32 %v650, %v653
    %657 = vrot.lane.b32.xlu0 %v655, 96
    %v658 = vpop.permute.xlu0 %657
    %v660 = vsub.f32 %v638, %v658
    %v661 = vmul.f32 %v660, 1.442695
    %v662 = vpow.pop %v661
    %v663 = vsub.f32 %v650, %v655
    %v664 = vmul.f32 %v663, 1.442695
    %v665 = vpow.pop %v664
    %v666 = vtanh.pop %v638
    %v667 = vxor.u32 %v638, 2147483648
    %v668 = vmul.f32 %v667, 1.442695
    %v669 = vpow.pop %v668
    %v670 = vadd.f32 %v669, 1.0
    %v671 = vrcp.pop %v670
    %v672 = vmul.f32 1.0, %v671
    %v673 = vrot.slane %v532, 6
    %v675 = vmul.f32 %v665, %v673
    %677 = vrot.lane.b32.xlu0 %v666, 64
    %v678 = vpop.permute.xlu0 %677
    %v680 = vmul.f32 %v662, %v678
    %682 = vrot.lane.b32.xlu0 %v680, 32
    %v683 = vpop.permute.xlu0 %682
    %v685 = vadd.f32 %v675, %v683
    %v687 = vrot.slane %v541, 6
    %v689 = vmul.f32 %v665, %v687
    %691 = vrot.lane.b32.xlu0 %v662, 32
    %v692 = vpop.permute.xlu0 %691
    %v694 = vadd.f32 %v689, %v692
    %696 = vrot.lane.b32.xlu0 %v685, 64
    %v697 = vpop.permute.xlu0 %696
    %v699 = vmul.f32 %v672, %v697
    %v700 = vmax.f32 %v694, 1.0
    %v701 = vrcp.pop %v700
    %703 = vrot.lane.b32.xlu0 %v701, 64
    %v704 = vpop.permute.xlu0 %703
    %v706 = vmul.f32 %v699, %v704
    %708 = vrot.lane.b32.xlu0 %v706, 32
    %v709 = vpop.permute.xlu0 %708
    %vm711 = vcmask 259076
    %712 = vst.msk [vmem:[#allocation2] sm:$0x30] %vm711, %v709
    %v713 = vrot.slane %v706, 4
    %714 = vrot.lane.b32.xlu0 %v713, 32
    %v715 = vpop.permute.xlu0 %714
    %v716 = vsel %vm153, %v715, 0
    %718 = vmatprep.subr.mxu0 0.0
    %719 = vmatpush1.msra.mxu0 %v266
    %720 = vmatprep.subr.mxu0 0.0
    %721 = vmatpush1.msra.mxu0 %v267
    %722 = vmatprep.subr.mxu0 0.0
    %723 = vmatpush1.msra.mxu0 %v268
    %724 = vmatprep.subr.mxu0 0.0
    %725 = vmatpush1.msra.mxu0 %v269
    %726 = vmatprep.subr.mxu0 0.0
    %727 = vmatpush1.msra.mxu0 0.0
    %728 = vmatprep.subr.mxu0 0.0
    %729 = vmatpush1.msra.mxu0 0.0
    %730 = vmatprep.subr.mxu0 0.0
    %731 = vmatpush1.msra.mxu0 0.0
    %732 = vmatprep.subr.mxu0 0.0
    %733 = vmatpush1.msra.mxu0 0.0
    %734 = vmatprep.subr.mxu0 0.0
    %735 = vmatpush1.msra.mxu0 0.0
    %736 = vmatprep.subr.mxu0 0.0
    %737 = vmatpush1.msra.mxu0 0.0
    %738 = vmatprep.subr.mxu0 0.0
    %739 = vmatpush1.msra.mxu0 0.0
    %740 = vmatprep.subr.mxu0 0.0
    %741 = vmatpush1.msra.mxu0 0.0
    %742 = vmatprep.subr.mxu0 0.0
    %743 = vmatpush1.msra.mxu0 0.0
    %744 = vmatprep.subr.mxu0 0.0
    %745 = vmatpush1.msra.mxu0 0.0
    %746 = vmatprep.subr.mxu0 0.0
    %747 = vmatpush1.msra.mxu0 0.0
    %748 = vmatprep.subr.mxu0 0.0
    %749 = vmatpush1.msra.mxu0 0.0
    %750 = vmatprep.subr.mxu0 0.0
    %751 = vmatpush1.msra.mxu0 0.0
    %752 = vmatprep.subr.mxu0 0.0
    %753 = vmatpush1.msra.mxu0 0.0
    %754 = vmatprep.subr.mxu0 0.0
    %755 = vmatpush1.msra.mxu0 0.0
    %756 = vmatprep.subr.mxu0 0.0
    %757 = vmatpush1.msra.mxu0 0.0
    %758 = vmatprep.subr.mxu0 0.0
    %759 = vmatpush1.msra.mxu0 0.0
    %760 = vmatprep.subr.mxu0 0.0
    %761 = vmatpush1.msra.mxu0 0.0
    %762 = vmatprep.subr.mxu0 0.0
    %763 = vmatpush1.msra.mxu0 0.0
    %764 = vmatprep.subr.mxu0 0.0
    %765 = vmatpush1.msra.mxu0 0.0
    %766 = vmatprep.subr.mxu0 0.0
    %767 = vmatpush1.msra.mxu0 0.0
    %768 = vmatprep.subr.mxu0 0.0
    %769 = vmatpush1.msra.mxu0 0.0
    %770 = vmatprep.subr.mxu0 0.0
    %771 = vmatpush1.msra.mxu0 0.0
    %772 = vmatprep.subr.mxu0 0.0
    %773 = vmatpush1.msra.mxu0 0.0
    %774 = vmatprep.subr.mxu0 0.0
    %775 = vmatpush1.msra.mxu0 0.0
    %776 = vmatprep.subr.mxu0 0.0
    %777 = vmatpush1.msra.mxu0 0.0
    %778 = vmatprep.subr.mxu0 0.0
    %779 = vmatpush1.msra.mxu0 0.0
    %780 = vmatprep.subr.mxu0 0.0
    %781 = vmatpush1.msra.mxu0 0.0
    %782 = vmatprep.mubr.f32.mxu0 0.0
    %783 = vmatmul.mubr.f32.gmra.mrb[0].mxu0 %v716
    %v784 = vpop.f32.mrb[0].mxu0
    %v785 = vadd.f32 0.0, %v784
    %v786 = vpop.f32.mrb[0].mxu0
    %787 = vdwg.mxu0
    %v789 = vrot.slane %v785, 2
    %v791 = vadd.f32 %v263, %v789
    %v792 = vmin.f32 %v791, 0.0
    %v793 = vand.u32 2147483647, %v791
    %v794 = vsub.f32 0.0, %v793
    %v795 = vmul.f32 %v794, 1.442695
    %v796 = vpow.pop %v795
    %v797 = vadd.f32 %v796, 1.0
    %v798 = vlog2.pop %v797
    %v799 = vmul.f32 %v798, 0.6931472
    %v800 = vsub.f32 %v792, %v799
    %v801 = vrot.slane %v655, 6
    %v803 = vadd.f32 %v800, %v801
    %805 = vrot.lane.b32.xlu0 %v791, 32
    %v806 = vpop.permute.xlu0 %805
    %v808 = vmax.f32 %v803, %v806
    %810 = vrot.lane.b32.xlu0 %v808, 96
    %v811 = vpop.permute.xlu0 %810
    %v813 = vsub.f32 %v791, %v811
    %v814 = vmul.f32 %v813, 1.442695
    %v815 = vpow.pop %v814
    %v816 = vsub.f32 %v803, %v808
    %v817 = vmul.f32 %v816, 1.442695
    %v818 = vpow.pop %v817
    %v819 = vtanh.pop %v791
    %v820 = vxor.u32 %v791, 2147483648
    %v821 = vmul.f32 %v820, 1.442695
    %v822 = vpow.pop %v821
    %v823 = vadd.f32 %v822, 1.0
    %v824 = vrcp.pop %v823
    %v825 = vmul.f32 1.0, %v824
    %v826 = vrot.slane %v685, 6
    %v828 = vmul.f32 %v818, %v826
    %830 = vrot.lane.b32.xlu0 %v819, 64
    %v831 = vpop.permute.xlu0 %830
    %v833 = vmul.f32 %v815, %v831
    %835 = vrot.lane.b32.xlu0 %v833, 32
    %v836 = vpop.permute.xlu0 %835
    %v838 = vadd.f32 %v828, %v836
    %v840 = vrot.slane %v694, 6
    %v842 = vmul.f32 %v818, %v840
    %844 = vrot.lane.b32.xlu0 %v815, 32
    %v845 = vpop.permute.xlu0 %844
    %v847 = vadd.f32 %v842, %v845
    %849 = vrot.lane.b32.xlu0 %v838, 64
    %v850 = vpop.permute.xlu0 %849
    %v852 = vmul.f32 %v825, %v850
    %v853 = vmax.f32 %v847, 1.0
    %v854 = vrcp.pop %v853
    %856 = vrot.lane.b32.xlu0 %v854, 64
    %v857 = vpop.permute.xlu0 %856
    %v859 = vmul.f32 %v852, %v857
    %861 = vrot.lane.b32.xlu0 %v859, 32
    %v862 = vpop.permute.xlu0 %861
    %vm864 = vcmask 261126
    %865 = vst.msk [vmem:[#allocation2] sm:$0xc0] %vm864, %v862
    %v866 = vld [vmem:[#allocation2] sm:$0xff]
    %v867 = vadd.f32 %v148, %v866
    %s868 = scalar_lea.vmem %s3, 1
    %v869 = vld [vmem:[%s868] sm:$0x1]
    %s870 = scalar_lea.vmem %s4, 1
    %v871 = vld [vmem:[%s870] sm:$0x1]
    %v872 = vsel %vm153, %v867, 0.0
    %873 = vadd.xlane.f32.xlu0 %v872
    %v874 = vpop.xlane.xlu0 %873
    %v875 = vmul.f32 %v874, %v157
    %v876 = vsub.f32 %v867, %v875
    %v877 = vmul.f32 %v876, %v876
    %v878 = vsel %vm153, %v877, 0.0
    %879 = vadd.xlane.f32.xlu0 %v878
    %v880 = vpop.xlane.xlu0 %879
    %v881 = vmul.f32 %v880, %v157
    %v882 = vadd.f32 %v881, 1e-05
    %v883 = vrsqrt.pop %v882
    %v884 = vmul.f32 %v876, %v883
    %v886 = vlaneseq
    %v887 = vshrl.u32 %v886, 7
    %v888 = vsub.s32 0, %v887
    %v889 = vrot.slane %v869, %v888
    %v891 = vmul.f32 %v884, %v889
    %v893 = vlaneseq
    %v894 = vshrl.u32 %v893, 7
    %v895 = vsub.s32 0, %v894
    %v896 = vrot.slane %v871, %v895
    %v898 = vadd.f32 %v891, %v896
    %s899 = scalar_lea.vmem %s5, 32
    %v900 = vld [vmem:[%s899] sm:$0xff]
    %v901 = vld [vmem:[%s899 + $0x8] sm:$0xff]
    %v902 = vld [vmem:[%s899 + $0x10] sm:$0xff]
    %v903 = vld [vmem:[%s899 + $0x18] sm:$0xff]
    %s904 = scalar_lea.vmem %s7, 1
    %v905 = vld [vmem:[%s904] sm:$0x1]
    %v907 = vlaneseq
    %v908 = vshrl.u32 %v907, 7
    %v909 = vsub.s32 0, %v908
    %v910 = vrot.slane %v905, %v909
    %v913 = vsel %vm153, %v898, 0
    %915 = vmatprep.subr.mxu0 0.0
    %916 = vmatpush1.msra.mxu0 %v900
    %917 = vmatprep.subr.mxu0 0.0
    %918 = vmatpush1.msra.mxu0 %v901
    %919 = vmatprep.subr.mxu0 0.0
    %920 = vmatpush1.msra.mxu0 %v902
    %921 = vmatprep.subr.mxu0 0.0
    %922 = vmatpush1.msra.mxu0 %v903
    %923 = vmatprep.subr.mxu0 0.0
    %924 = vmatpush1.msra.mxu0 0.0
    %925 = vmatprep.subr.mxu0 0.0
    %926 = vmatpush1.msra.mxu0 0.0
    %927 = vmatprep.subr.mxu0 0.0
    %928 = vmatpush1.msra.mxu0 0.0
    %929 = vmatprep.subr.mxu0 0.0
    %930 = vmatpush1.msra.mxu0 0.0
    %931 = vmatprep.subr.mxu0 0.0
    %932 = vmatpush1.msra.mxu0 0.0
    %933 = vmatprep.subr.mxu0 0.0
    %934 = vmatpush1.msra.mxu0 0.0
    %935 = vmatprep.subr.mxu0 0.0
    %936 = vmatpush1.msra.mxu0 0.0
    %937 = vmatprep.subr.mxu0 0.0
    %938 = vmatpush1.msra.mxu0 0.0
    %939 = vmatprep.subr.mxu0 0.0
    %940 = vmatpush1.msra.mxu0 0.0
    %941 = vmatprep.subr.mxu0 0.0
    %942 = vmatpush1.msra.mxu0 0.0
    %943 = vmatprep.subr.mxu0 0.0
    %944 = vmatpush1.msra.mxu0 0.0
    %945 = vmatprep.subr.mxu0 0.0
    %946 = vmatpush1.msra.mxu0 0.0
    %947 = vmatprep.subr.mxu0 0.0
    %948 = vmatpush1.msra.mxu0 0.0
    %949 = vmatprep.subr.mxu0 0.0
    %950 = vmatpush1.msra.mxu0 0.0
    %951 = vmatprep.subr.mxu0 0.0
    %952 = vmatpush1.msra.mxu0 0.0
    %953 = vmatprep.subr.mxu0 0.0
    %954 = vmatpush1.msra.mxu0 0.0
    %955 = vmatprep.subr.mxu0 0.0
    %956 = vmatpush1.msra.mxu0 0.0
    %957 = vmatprep.subr.mxu0 0.0
    %958 = vmatpush1.msra.mxu0 0.0
    %959 = vmatprep.subr.mxu0 0.0
    %960 = vmatpush1.msra.mxu0 0.0
    %961 = vmatprep.subr.mxu0 0.0
    %962 = vmatpush1.msra.mxu0 0.0
    %963 = vmatprep.subr.mxu0 0.0
    %964 = vmatpush1.msra.mxu0 0.0
    %965 = vmatprep.subr.mxu0 0.0
    %966 = vmatpush1.msra.mxu0 0.0
    %967 = vmatprep.subr.mxu0 0.0
    %968 = vmatpush1.msra.mxu0 0.0
    %969 = vmatprep.subr.mxu0 0.0
    %970 = vmatpush1.msra.mxu0 0.0
    %971 = vmatprep.subr.mxu0 0.0
    %972 = vmatpush1.msra.mxu0 0.0
    %973 = vmatprep.subr.mxu0 0.0
    %974 = vmatpush1.msra.mxu0 0.0
    %975 = vmatprep.subr.mxu0 0.0
    %976 = vmatpush1.msra.mxu0 0.0
    %977 = vmatprep.subr.mxu0 0.0
    %978 = vmatpush1.msra.mxu0 0.0
    %979 = vmatprep.mubr.f32.mxu0 0.0
    %980 = vmatmul.mubr.f32.gmra.mrb[0].mxu0 %v913
    %v981 = vpop.f32.mrb[0].mxu0
    %v982 = vadd.f32 %v910, %v981
    %v983 = vpop.f32.mrb[0].mxu0
    %984 = vdwg.mxu0
    %s985 = scalar_lea.vmem [#allocation3], 32
    %v986 = vld [vmem:[%s985] sm:$0xff]
    %v987 = vld [vmem:[%s985 + $0x8] sm:$0xff]
    %v988 = vld [vmem:[%s985 + $0x10] sm:$0xff]
    %v989 = vld [vmem:[%s985 + $0x18] sm:$0xff]
    %990 = vmatprep.subr.mxu0 0.0
    %991 = vmatpush1.msra.mxu0 %v986
    %992 = vmatprep.subr.mxu0 0.0
    %993 = vmatpush1.msra.mxu0 %v987
    %994 = vmatprep.subr.mxu0 0.0
    %995 = vmatpush1.msra.mxu0 %v988
    %996 = vmatprep.subr.mxu0 0.0
    %997 = vmatpush1.msra.mxu0 %v989
    %998 = vmatprep.subr.mxu0 0.0
    %999 = vmatpush1.msra.mxu0 0.0
    %1000 = vmatprep.subr.mxu0 0.0
    %1001 = vmatpush1.msra.mxu0 0.0
    %1002 = vmatprep.subr.mxu0 0.0
    %1003 = vmatpush1.msra.mxu0 0.0
    %1004 = vmatprep.subr.mxu0 0.0
    %1005 = vmatpush1.msra.mxu0 0.0
    %1006 = vmatprep.subr.mxu0 0.0
    %1007 = vmatpush1.msra.mxu0 0.0
    %1008 = vmatprep.subr.mxu0 0.0
    %1009 = vmatpush1.msra.mxu0 0.0
    %1010 = vmatprep.subr.mxu0 0.0
    %1011 = vmatpush1.msra.mxu0 0.0
    %1012 = vmatprep.subr.mxu0 0.0
    %1013 = vmatpush1.msra.mxu0 0.0
    %1014 = vmatprep.subr.mxu0 0.0
    %1015 = vmatpush1.msra.mxu0 0.0
    %1016 = vmatprep.subr.mxu0 0.0
    %1017 = vmatpush1.msra.mxu0 0.0
    %1018 = vmatprep.subr.mxu0 0.0
    %1019 = vmatpush1.msra.mxu0 0.0
    %1020 = vmatprep.subr.mxu0 0.0
    %1021 = vmatpush1.msra.mxu0 0.0
    %1022 = vmatprep.subr.mxu0 0.0
    %1023 = vmatpush1.msra.mxu0 0.0
    %1024 = vmatprep.subr.mxu0 0.0
    %1025 = vmatpush1.msra.mxu0 0.0
    %1026 = vmatprep.subr.mxu0 0.0
    %1027 = vmatpush1.msra.mxu0 0.0
    %1028 = vmatprep.subr.mxu0 0.0
    %1029 = vmatpush1.msra.mxu0 0.0
    %1030 = vmatprep.subr.mxu0 0.0
    %1031 = vmatpush1.msra.mxu0 0.0
    %1032 = vmatprep.subr.mxu0 0.0
    %1033 = vmatpush1.msra.mxu0 0.0
    %1034 = vmatprep.subr.mxu0 0.0
    %1035 = vmatpush1.msra.mxu0 0.0
    %1036 = vmatprep.subr.mxu0 0.0
    %1037 = vmatpush1.msra.mxu0 0.0
    %1038 = vmatprep.subr.mxu0 0.0
    %1039 = vmatpush1.msra.mxu0 0.0
    %1040 = vmatprep.subr.mxu0 0.0
    %1041 = vmatpush1.msra.mxu0 0.0
    %1042 = vmatprep.subr.mxu0 0.0
    %1043 = vmatpush1.msra.mxu0 0.0
    %1044 = vmatprep.subr.mxu0 0.0
    %1045 = vmatpush1.msra.mxu0 0.0
    %1046 = vmatprep.subr.mxu0 0.0
    %1047 = vmatpush1.msra.mxu0 0.0
    %1048 = vmatprep.subr.mxu0 0.0
    %1049 = vmatpush1.msra.mxu0 0.0
    %1050 = vmatprep.subr.mxu0 0.0
    %1051 = vmatpush1.msra.mxu0 0.0
    %1052 = vmatprep.subr.mxu0 0.0
    %1053 = vmatpush1.msra.mxu0 0.0
    %1054 = vmatprep.mubr.f32.mxu0 0.0
    %1055 = vmatmul.mubr.f32.gmra.mrb[0].mxu0 %v271
    %v1056 = vpop.f32.mrb[0].mxu0
    %v1057 = vadd.f32 0.0, %v1056
    %v1058 = vpop.f32.mrb[0].mxu0
    %1059 = vdwg.mxu0
    %v1060 = vadd.f32 %v982, %v1057
    %v1061 = vmin.f32 %v1060, 0.0
    %v1062 = vand.u32 2147483647, %v1060
    %v1063 = vsub.f32 0.0, %v1062
    %v1064 = vmul.f32 %v1063, 1.442695
    %v1065 = vpow.pop %v1064
    %v1066 = vadd.f32 %v1065, 1.0
    %v1067 = vlog2.pop %v1066
    %v1068 = vmul.f32 %v1067, 0.6931472
    %v1069 = vsub.f32 %v1061, %v1068
    %v1070 = vadd.f32 %v1069, 0.0
    %1072 = vrot.lane.b32.xlu0 %v1060, 32
    %v1073 = vpop.permute.xlu0 %1072
    %v1075 = vmax.f32 %v1070, %v1073
    %1077 = vrot.lane.b32.xlu0 %v1075, 96
    %v1078 = vpop.permute.xlu0 %1077
    %v1080 = vsub.f32 %v1060, %v1078
    %v1081 = vmul.f32 %v1080, 1.442695
    %v1082 = vpow.pop %v1081
    %v1083 = vsub.f32 %v1070, %v1075
    %v1084 = vmul.f32 %v1083, 1.442695
    %v1085 = vpow.pop %v1084
    %v1086 = vtanh.pop %v1060
    %v1087 = vxor.u32 %v1060, 2147483648
    %v1088 = vmul.f32 %v1087, 1.442695
    %v1089 = vpow.pop %v1088
    %v1090 = vadd.f32 %v1089, 1.0
    %v1091 = vrcp.pop %v1090
    %v1092 = vmul.f32 1.0, %v1091
    %v1093 = vmul.f32 %v1085, 0.0
    %1095 = vrot.lane.b32.xlu0 %v1086, 64
    %v1096 = vpop.permute.xlu0 %1095
    %v1098 = vmul.f32 %v1082, %v1096
    %1100 = vrot.lane.b32.xlu0 %v1098, 32
    %v1101 = vpop.permute.xlu0 %1100
    %v1103 = vadd.f32 %v1093, %v1101
    %1105 = vrot.lane.b32.xlu0 %v1082, 32
    %v1106 = vpop.permute.xlu0 %1105
    %v1108 = vadd.f32 %v1093, %v1106
    %1110 = vrot.lane.b32.xlu0 %v1103, 64
    %v1111 = vpop.permute.xlu0 %1110
    %v1113 = vmul.f32 %v1092, %v1111
    %v1114 = vmax.f32 %v1108, 1.0
    %v1115 = vrcp.pop %v1114
    %1117 = vrot.lane.b32.xlu0 %v1115, 64
    %v1118 = vpop.permute.xlu0 %1117
    %v1120 = vmul.f32 %v1113, %v1118
    %1122 = vrot.lane.b32.xlu0 %v1120, 32
    %v1123 = vpop.permute.xlu0 %1122
    %1125 = vst.msk [vmem:[#allocation2] sm:$0x3] %vm408, %v1123
    %v1126 = vsel %vm153, %v1123, 0
    %1128 = vmatprep.subr.mxu0 0.0
    %1129 = vmatpush1.msra.mxu0 %v986
    %1130 = vmatprep.subr.mxu0 0.0
    %1131 = vmatpush1.msra.mxu0 %v987
    %1132 = vmatprep.subr.mxu0 0.0
    %1133 = vmatpush1.msra.mxu0 %v988
    %1134 = vmatprep.subr.mxu0 0.0
    %1135 = vmatpush1.msra.mxu0 %v989
    %1136 = vmatprep.subr.mxu0 0.0
    %1137 = vmatpush1.msra.mxu0 0.0
    %1138 = vmatprep.subr.mxu0 0.0
    %1139 = vmatpush1.msra.mxu0 0.0
    %1140 = vmatprep.subr.mxu0 0.0
    %1141 = vmatpush1.msra.mxu0 0.0
    %1142 = vmatprep.subr.mxu0 0.0
    %1143 = vmatpush1.msra.mxu0 0.0
    %1144 = vmatprep.subr.mxu0 0.0
    %1145 = vmatpush1.msra.mxu0 0.0
    %1146 = vmatprep.subr.mxu0 0.0
    %1147 = vmatpush1.msra.mxu0 0.0
    %1148 = vmatprep.subr.mxu0 0.0
    %1149 = vmatpush1.msra.mxu0 0.0
    %1150 = vmatprep.subr.mxu0 0.0
    %1151 = vmatpush1.msra.mxu0 0.0
    %1152 = vmatprep.subr.mxu0 0.0
    %1153 = vmatpush1.msra.mxu0 0.0
    %1154 = vmatprep.subr.mxu0 0.0
    %1155 = vmatpush1.msra.mxu0 0.0
    %1156 = vmatprep.subr.mxu0 0.0
    %1157 = vmatpush1.msra.mxu0 0.0
    %1158 = vmatprep.subr.mxu0 0.0
    %1159 = vmatpush1.msra.mxu0 0.0
    %1160 = vmatprep.subr.mxu0 0.0
    %1161 = vmatpush1.msra.mxu0 0.0
    %1162 = vmatprep.subr.mxu0 0.0
    %1163 = vmatpush1.msra.mxu0 0.0
    %1164 = vmatprep.subr.mxu0 0.0
    %1165 = vmatpush1.msra.mxu0 0.0
    %1166 = vmatprep.subr.mxu0 0.0
    %1167 = vmatpush1.msra.mxu0 0.0
    %1168 = vmatprep.subr.mxu0 0.0
    %1169 = vmatpush1.msra.mxu0 0.0
    %1170 = vmatprep.subr.mxu0 0.0
    %1171 = vmatpush1.msra.mxu0 0.0
    %1172 = vmatprep.subr.mxu0 0.0
    %1173 = vmatpush1.msra.mxu0 0.0
    %1174 = vmatprep.subr.mxu0 0.0
    %1175 = vmatpush1.msra.mxu0 0.0
    %1176 = vmatprep.subr.mxu0 0.0
    %1177 = vmatpush1.msra.mxu0 0.0
    %1178 = vmatprep.subr.mxu0 0.0
    %1179 = vmatpush1.msra.mxu0 0.0
    %1180 = vmatprep.subr.mxu0 0.0
    %1181 = vmatpush1.msra.mxu0 0.0
    %1182 = vmatprep.subr.mxu0 0.0
    %1183 = vmatpush1.msra.mxu0 0.0
    %1184 = vmatprep.subr.mxu0 0.0
    %1185 = vmatpush1.msra.mxu0 0.0
    %1186 = vmatprep.subr.mxu0 0.0
    %1187 = vmatpush1.msra.mxu0 0.0
    %1188 = vmatprep.subr.mxu0 0.0
    %1189 = vmatpush1.msra.mxu0 0.0
    %1190 = vmatprep.subr.mxu0 0.0
    %1191 = vmatpush1.msra.mxu0 0.0
    %1192 = vmatprep.mubr.f32.mxu0 0.0
    %1193 = vmatmul.mubr.f32.gmra.mrb[0].mxu0 %v1126
    %v1194 = vpop.f32.mrb[0].mxu0
    %v1195 = vadd.f32 0.0, %v1194
    %v1196 = vpop.f32.mrb[0].mxu0
    %1197 = vdwg.mxu0
    %v1199 = vrot.slane %v1195, 6
    %v1201 = vadd.f32 %v982, %v1199
    %v1202 = vmin.f32 %v1201, 0.0
    %v1203 = vand.u32 2147483647, %v1201
    %v1204 = vsub.f32 0.0, %v1203
    %v1205 = vmul.f32 %v1204, 1.442695
    %v1206 = vpow.pop %v1205
    %v1207 = vadd.f32 %v1206, 1.0
    %v1208 = vlog2.pop %v1207
    %v1209 = vmul.f32 %v1208, 0.6931472
    %v1210 = vsub.f32 %v1202, %v1209
    %v1211 = vrot.slane %v1075, 6
    %v1213 = vadd.f32 %v1210, %v1211
    %1215 = vrot.lane.b32.xlu0 %v1201, 32
    %v1216 = vpop.permute.xlu0 %1215
    %v1218 = vmax.f32 %v1213, %v1216
    %1220 = vrot.lane.b32.xlu0 %v1218, 96
    %v1221 = vpop.permute.xlu0 %1220
    %v1223 = vsub.f32 %v1201, %v1221
    %v1224 = vmul.f32 %v1223, 1.442695
    %v1225 = vpow.pop %v1224
    %v1226 = vsub.f32 %v1213, %v1218
    %v1227 = vmul.f32 %v1226, 1.442695
    %v1228 = vpow.pop %v1227
    %v1229 = vtanh.pop %v1201
    %v1230 = vxor.u32 %v1201, 2147483648
    %v1231 = vmul.f32 %v1230, 1.442695
    %v1232 = vpow.pop %v1231
    %v1233 = vadd.f32 %v1232, 1.0
    %v1234 = vrcp.pop %v1233
    %v1235 = vmul.f32 1.0, %v1234
    %v1236 = vrot.slane %v1103, 6
    %v1238 = vmul.f32 %v1228, %v1236
    %1240 = vrot.lane.b32.xlu0 %v1229, 64
    %v1241 = vpop.permute.xlu0 %1240
    %v1243 = vmul.f32 %v1225, %v1241
    %1245 = vrot.lane.b32.xlu0 %v1243, 32
    %v1246 = vpop.permute.xlu0 %1245
    %v1248 = vadd.f32 %v1238, %v1246
    %v1250 = vrot.slane %v1108, 6
    %v1252 = vmul.f32 %v1228, %v1250
    %1254 = vrot.lane.b32.xlu0 %v1225, 32
    %v1255 = vpop.permute.xlu0 %1254
    %v1257 = vadd.f32 %v1252, %v1255
    %1259 = vrot.lane.b32.xlu0 %v1248, 64
    %v1260 = vpop.permute.xlu0 %1259
    %v1262 = vmul.f32 %v1235, %v1260
    %v1263 = vmax.f32 %v1257, 1.0
    %v1264 = vrcp.pop %v1263
    %1266 = vrot.lane.b32.xlu0 %v1264, 64
    %v1267 = vpop.permute.xlu0 %1266
    %v1269 = vmul.f32 %v1262, %v1267
    %1271 = vrot.lane.b32.xlu0 %v1269, 32
    %v1272 = vpop.permute.xlu0 %1271
    %1274 = vst.msk [vmem:[#allocation2] sm:$0xc] %vm558, %v1272
    %v1275 = vrot.slane %v1269, 2
    %1276 = vrot.lane.b32.xlu0 %v1275, 32
    %v1277 = vpop.permute.xlu0 %1276
    %v1278 = vsel %vm153, %v1277, 0
    %1280 = vmatprep.subr.mxu0 0.0
    %1281 = vmatpush1.msra.mxu0 %v986
    %1282 = vmatprep.subr.mxu0 0.0
    %1283 = vmatpush1.msra.mxu0 %v987
    %1284 = vmatprep.subr.mxu0 0.0
    %1285 = vmatpush1.msra.mxu0 %v988
    %1286 = vmatprep.subr.mxu0 0.0
    %1287 = vmatpush1.msra.mxu0 %v989
    %1288 = vmatprep.subr.mxu0 0.0
    %1289 = vmatpush1.msra.mxu0 0.0
    %1290 = vmatprep.subr.mxu0 0.0
    %1291 = vmatpush1.msra.mxu0 0.0
    %1292 = vmatprep.subr.mxu0 0.0
    %1293 = vmatpush1.msra.mxu0 0.0
    %1294 = vmatprep.subr.mxu0 0.0
    %1295 = vmatpush1.msra.mxu0 0.0
    %1296 = vmatprep.subr.mxu0 0.0
    %1297 = vmatpush1.msra.mxu0 0.0
    %1298 = vmatprep.subr.mxu0 0.0
    %1299 = vmatpush1.msra.mxu0 0.0
    %1300 = vmatprep.subr.mxu0 0.0
    %1301 = vmatpush1.msra.mxu0 0.0
    %1302 = vmatprep.subr.mxu0 0.0
    %1303 = vmatpush1.msra.mxu0 0.0
    %1304 = vmatprep.subr.mxu0 0.0
    %1305 = vmatpush1.msra.mxu0 0.0
    %1306 = vmatprep.subr.mxu0 0.0
    %1307 = vmatpush1.msra.mxu0 0.0
    %1308 = vmatprep.subr.mxu0 0.0
    %1309 = vmatpush1.msra.mxu0 0.0
    %1310 = vmatprep.subr.mxu0 0.0
    %1311 = vmatpush1.msra.mxu0 0.0
    %1312 = vmatprep.subr.mxu0 0.0
    %1313 = vmatpush1.msra.mxu0 0.0
    %1314 = vmatprep.subr.mxu0 0.0
    %1315 = vmatpush1.msra.mxu0 0.0
    %1316 = vmatprep.subr.mxu0 0.0
    %1317 = vmatpush1.msra.mxu0 0.0
    %1318 = vmatprep.subr.mxu0 0.0
    %1319 = vmatpush1.msra.mxu0 0.0
    %1320 = vmatprep.subr.mxu0 0.0
    %1321 = vmatpush1.msra.mxu0 0.0
    %1322 = vmatprep.subr.mxu0 0.0
    %1323 = vmatpush1.msra.mxu0 0.0
    %1324 = vmatprep.subr.mxu0 0.0
    %1325 = vmatpush1.msra.mxu0 0.0
    %1326 = vmatprep.subr.mxu0 0.0
    %1327 = vmatpush1.msra.mxu0 0.0
    %1328 = vmatprep.subr.mxu0 0.0
    %1329 = vmatpush1.msra.mxu0 0.0
    %1330 = vmatprep.subr.mxu0 0.0
    %1331 = vmatpush1.msra.mxu0 0.0
    %1332 = vmatprep.subr.mxu0 0.0
    %1333 = vmatpush1.msra.mxu0 0.0
    %1334 = vmatprep.subr.mxu0 0.0
    %1335 = vmatpush1.msra.mxu0 0.0
    %1336 = vmatprep.subr.mxu0 0.0
    %1337 = vmatpush1.msra.mxu0 0.0
    %1338 = vmatprep.subr.mxu0 0.0
    %1339 = vmatpush1.msra.mxu0 0.0
    %1340 = vmatprep.subr.mxu0 0.0
    %1341 = vmatpush1.msra.mxu0 0.0
    %1342 = vmatprep.subr.mxu0 0.0
    %1343 = vmatpush1.msra.mxu0 0.0
    %1344 = vmatprep.mubr.f32.mxu0 0.0
    %1345 = vmatmul.mubr.f32.gmra.mrb[0].mxu0 %v1278
    %v1346 = vpop.f32.mrb[0].mxu0
    %v1347 = vadd.f32 0.0, %v1346
    %v1348 = vpop.f32.mrb[0].mxu0
    %1349 = vdwg.mxu0
    %v1351 = vrot.slane %v1347, 4
    %v1353 = vadd.f32 %v982, %v1351
    %v1354 = vmin.f32 %v1353, 0.0
    %v1355 = vand.u32 2147483647, %v1353
    %v1356 = vsub.f32 0.0, %v1355
    %v1357 = vmul.f32 %v1356, 1.442695
    %v1358 = vpow.pop %v1357
    %v1359 = vadd.f32 %v1358, 1.0
    %v1360 = vlog2.pop %v1359
    %v1361 = vmul.f32 %v1360, 0.6931472
    %v1362 = vsub.f32 %v1354, %v1361
    %v1363 = vrot.slane %v1218, 6
    %v1365 = vadd.f32 %v1362, %v1363
    %1367 = vrot.lane.b32.xlu0 %v1353, 32
    %v1368 = vpop.permute.xlu0 %1367
    %v1370 = vmax.f32 %v1365, %v1368
    %1372 = vrot.lane.b32.xlu0 %v1370, 96
    %v1373 = vpop.permute.xlu0 %1372
    %v1375 = vsub.f32 %v1353, %v1373
    %v1376 = vmul.f32 %v1375, 1.442695
    %v1377 = vpow.pop %v1376
    %v1378 = vsub.f32 %v1365, %v1370
    %v1379 = vmul.f32 %v1378, 1.442695
    %v1380 = vpow.pop %v1379
    %v1381 = vtanh.pop %v1353
    %v1382 = vxor.u32 %v1353, 2147483648
    %v1383 = vmul.f32 %v1382, 1.442695
    %v1384 = vpow.pop %v1383
    %v1385 = vadd.f32 %v1384, 1.0
    %v1386 = vrcp.pop %v1385
    %v1387 = vmul.f32 1.0, %v1386
    %v1388 = vrot.slane %v1248, 6
    %v1390 = vmul.f32 %v1380, %v1388
    %1392 = vrot.lane.b32.xlu0 %v1381, 64
    %v1393 = vpop.permute.xlu0 %1392
    %v1395 = vmul.f32 %v1377, %v1393
    %1397 = vrot.lane.b32.xlu0 %v1395, 32
    %v1398 = vpop.permute.xlu0 %1397
    %v1400 = vadd.f32 %v1390, %v1398
    %v1402 = vrot.slane %v1257, 6
    %v1404 = vmul.f32 %v1380, %v1402
    %1406 = vrot.lane.b32.xlu0 %v1377, 32
    %v1407 = vpop.permute.xlu0 %1406
    %v1409 = vadd.f32 %v1404, %v1407
    %1411 = vrot.lane.b32.xlu0 %v1400, 64
    %v1412 = vpop.permute.xlu0 %1411
    %v1414 = vmul.f32 %v1387, %v1412
    %v1415 = vmax.f32 %v1409, 1.0
    %v1416 = vrcp.pop %v1415
    %1418 = vrot.lane.b32.xlu0 %v1416, 64
    %v1419 = vpop.permute.xlu0 %1418
    %v1421 = vmul.f32 %v1414, %v1419
    %1423 = vrot.lane.b32.xlu0 %v1421, 32
    %v1424 = vpop.permute.xlu0 %1423
    %1426 = vst.msk [vmem:[#allocation2] sm:$0x30] %vm711, %v1424
    %v1427 = vrot.slane %v1421, 4
    %1428 = vrot.lane.b32.xlu0 %v1427, 32
    %v1429 = vpop.permute.xlu0 %1428
    %v1430 = vsel %vm153, %v1429, 0
    %1432 = vmatprep.subr.mxu0 0.0
    %1433 = vmatpush1.msra.mxu0 %v986
    %1434 = vmatprep.subr.mxu0 0.0
    %1435 = vmatpush1.msra.mxu0 %v987
    %1436 = vmatprep.subr.mxu0 0.0
    %1437 = vmatpush1.msra.mxu0 %v988
    %1438 = vmatprep.subr.mxu0 0.0
    %1439 = vmatpush1.msra.mxu0 %v989
    %1440 = vmatprep.subr.mxu0 0.0
    %1441 = vmatpush1.msra.mxu0 0.0
    %1442 = vmatprep.subr.mxu0 0.0
    %1443 = vmatpush1.msra.mxu0 0.0
    %1444 = vmatprep.subr.mxu0 0.0
    %1445 = vmatpush1.msra.mxu0 0.0
    %1446 = vmatprep.subr.mxu0 0.0
    %1447 = vmatpush1.msra.mxu0 0.0
    %1448 = vmatprep.subr.mxu0 0.0
    %1449 = vmatpush1.msra.mxu0 0.0
    %1450 = vmatprep.subr.mxu0 0.0
    %1451 = vmatpush1.msra.mxu0 0.0
    %1452 = vmatprep.subr.mxu0 0.0
    %1453 = vmatpush1.msra.mxu0 0.0
    %1454 = vmatprep.subr.mxu0 0.0
    %1455 = vmatpush1.msra.mxu0 0.0
    %1456 = vmatprep.subr.mxu0 0.0
    %1457 = vmatpush1.msra.mxu0 0.0
    %1458 = vmatprep.subr.mxu0 0.0
    %1459 = vmatpush1.msra.mxu0 0.0
    %1460 = vmatprep.subr.mxu0 0.0
    %1461 = vmatpush1.msra.mxu0 0.0
    %1462 = vmatprep.subr.mxu0 0.0
    %1463 = vmatpush1.msra.mxu0 0.0
    %1464 = vmatprep.subr.mxu0 0.0
    %1465 = vmatpush1.msra.mxu0 0.0
    %1466 = vmatprep.subr.mxu0 0.0
    %1467 = vmatpush1.msra.mxu0 0.0
    %1468 = vmatprep.subr.mxu0 0.0
    %1469 = vmatpush1.msra.mxu0 0.0
    %1470 = vmatprep.subr.mxu0 0.0
    %1471 = vmatpush1.msra.mxu0 0.0
    %1472 = vmatprep.subr.mxu0 0.0
    %1473 = vmatpush1.msra.mxu0 0.0
    %1474 = vmatprep.subr.mxu0 0.0
    %1475 = vmatpush1.msra.mxu0 0.0
    %1476 = vmatprep.subr.mxu0 0.0
    %1477 = vmatpush1.msra.mxu0 0.0
    %1478 = vmatprep.subr.mxu0 0.0
    %1479 = vmatpush1.msra.mxu0 0.0
    %1480 = vmatprep.subr.mxu0 0.0
    %1481 = vmatpush1.msra.mxu0 0.0
    %1482 = vmatprep.subr.mxu0 0.0
    %1483 = vmatpush1.msra.mxu0 0.0
    %1484 = vmatprep.subr.mxu0 0.0
    %1485 = vmatpush1.msra.mxu0 0.0
    %1486 = vmatprep.subr.mxu0 0.0
    %1487 = vmatpush1.msra.mxu0 0.0
    %1488 = vmatprep.subr.mxu0 0.0
    %1489 = vmatpush1.msra.mxu0 0.0
    %1490 = vmatprep.subr.mxu0 0.0
    %1491 = vmatpush1.msra.mxu0 0.0
    %1492 = vmatprep.subr.mxu0 0.0
    %1493 = vmatpush1.msra.mxu0 0.0
    %1494 = vmatprep.subr.mxu0 0.0
    %1495 = vmatpush1.msra.mxu0 0.0
    %1496 = vmatprep.mubr.f32.mxu0 0.0
    %1497 = vmatmul.mubr.f32.gmra.mrb[0].mxu0 %v1430
    %v1498 = vpop.f32.mrb[0].mxu0
    %v1499 = vadd.f32 0.0, %v1498
    %v1500 = vpop.f32.mrb[0].mxu0
    %1501 = vdwg.mxu0
    %v1503 = vrot.slane %v1499, 2
    %v1505 = vadd.f32 %v982, %v1503
    %v1506 = vmin.f32 %v1505, 0.0
    %v1507 = vand.u32 2147483647, %v1505
    %v1508 = vsub.f32 0.0, %v1507
    %v1509 = vmul.f32 %v1508, 1.442695
    %v1510 = vpow.pop %v1509
    %v1511 = vadd.f32 %v1510, 1.0
    %v1512 = vlog2.pop %v1511
    %v1513 = vmul.f32 %v1512, 0.6931472
    %v1514 = vsub.f32 %v1506, %v1513
    %v1515 = vrot.slane %v1370, 6
    %v1517 = vadd.f32 %v1514, %v1515
    %1519 = vrot.lane.b32.xlu0 %v1505, 32
    %v1520 = vpop.permute.xlu0 %1519
    %v1522 = vmax.f32 %v1517, %v1520
    %1524 = vrot.lane.b32.xlu0 %v1522, 96
    %v1525 = vpop.permute.xlu0 %1524
    %v1527 = vsub.f32 %v1505, %v1525
    %v1528 = vmul.f32 %v1527, 1.442695
    %v1529 = vpow.pop %v1528
    %v1530 = vsub.f32 %v1517, %v1522
    %v1531 = vmul.f32 %v1530, 1.442695
    %v1532 = vpow.pop %v1531
    %v1533 = vtanh.pop %v1505
    %v1534 = vxor.u32 %v1505, 2147483648
    %v1535 = vmul.f32 %v1534, 1.442695
    %v1536 = vpow.pop %v1535
    %v1537 = vadd.f32 %v1536, 1.0
    %v1538 = vrcp.pop %v1537
    %v1539 = vmul.f32 1.0, %v1538
    %v1540 = vrot.slane %v1400, 6
    %v1542 = vmul.f32 %v1532, %v1540
    %1544 = vrot.lane.b32.xlu0 %v1533, 64
    %v1545 = vpop.permute.xlu0 %1544
    %v1547 = vmul.f32 %v1529, %v1545
    %1549 = vrot.lane.b32.xlu0 %v1547, 32
    %v1550 = vpop.permute.xlu0 %1549
    %v1552 = vadd.f32 %v1542, %v1550
    %v1554 = vrot.slane %v1409, 6
    %v1556 = vmul.f32 %v1532, %v1554
    %1558 = vrot.lane.b32.xlu0 %v1529, 32
    %v1559 = vpop.permute.xlu0 %1558
    %v1561 = vadd.f32 %v1556, %v1559
    %1563 = vrot.lane.b32.xlu0 %v1552, 64
    %v1564 = vpop.permute.xlu0 %1563
    %v1566 = vmul.f32 %v1539, %v1564
    %v1567 = vmax.f32 %v1561, 1.0
    %v1568 = vrcp.pop %v1567
    %1570 = vrot.lane.b32.xlu0 %v1568, 64
    %v1571 = vpop.permute.xlu0 %1570
    %v1573 = vmul.f32 %v1566, %v1571
    %1575 = vrot.lane.b32.xlu0 %v1573, 32
    %v1576 = vpop.permute.xlu0 %1575
    %1578 = vst.msk [vmem:[#allocation2] sm:$0xc0] %vm864, %v1576
    %v1579 = vld [vmem:[#allocation2] sm:$0xff]
    %v1580 = vadd.f32 %v867, %v1579
    %v1581 = vld [vmem:[%s8] sm:$0x1]
    %v1582 = vld [vmem:[%s9] sm:$0x1]
    %v1583 = vsel %vm153, %v1580, 0.0
    %1584 = vadd.xlane.f32.xlu0 %v1583
    %v1585 = vpop.xlane.xlu0 %1584
    %v1586 = vmul.f32 %v1585, %v157
    %v1587 = vsub.f32 %v1580, %v1586
    %v1588 = vmul.f32 %v1587, %v1587
    %v1589 = vsel %vm153, %v1588, 0.0
    %1590 = vadd.xlane.f32.xlu0 %v1589
    %v1591 = vpop.xlane.xlu0 %1590
    %v1592 = vmul.f32 %v1591, %v157
    %v1593 = vadd.f32 %v1592, 1e-05
    %v1594 = vrsqrt.pop %v1593
    %v1595 = vmul.f32 %v1587, %v1594
    %v1597 = vlaneseq
    %v1598 = vshrl.u32 %v1597, 7
    %v1599 = vsub.s32 0, %v1598
    %v1600 = vrot.slane %v1581, %v1599
    %v1602 = vmul.f32 %v1595, %v1600
    %v1604 = vlaneseq
    %v1605 = vshrl.u32 %v1604, 7
    %v1606 = vsub.s32 0, %v1605
    %v1607 = vrot.slane %v1582, %v1606
    %v1609 = vadd.f32 %v1602, %v1607
    %v1610 = vld [vmem:[%s10] sm:$0xff]
    %v1611 = vld [vmem:[%s10 + $0x8] sm:$0xff]
    %v1612 = vld [vmem:[%s10 + $0x10] sm:$0xff]
    %v1613 = vld [vmem:[%s10 + $0x18] sm:$0xff]
    %v1614 = vld [vmem:[#allocation5] sm:$0x1]
    %v1616 = vlaneseq
    %v1617 = vshrl.u32 %v1616, 7
    %v1618 = vsub.s32 0, %v1617
    %v1619 = vrot.slane %v1614, %v1618
    %v1622 = vsel %vm153, %v1609, 0
    %1624 = vmatprep.subr.mxu0 0.0
    %1625 = vmatpush1.msra.mxu0 %v1610
    %1626 = vmatprep.subr.mxu0 0.0
    %1627 = vmatpush1.msra.mxu0 %v1611
    %1628 = vmatprep.subr.mxu0 0.0
    %1629 = vmatpush1.msra.mxu0 %v1612
    %1630 = vmatprep.subr.mxu0 0.0
    %1631 = vmatpush1.msra.mxu0 %v1613
    %1632 = vmatprep.subr.mxu0 0.0
    %1633 = vmatpush1.msra.mxu0 0.0
    %1634 = vmatprep.subr.mxu0 0.0
    %1635 = vmatpush1.msra.mxu0 0.0
    %1636 = vmatprep.subr.mxu0 0.0
    %1637 = vmatpush1.msra.mxu0 0.0
    %1638 = vmatprep.subr.mxu0 0.0
    %1639 = vmatpush1.msra.mxu0 0.0
    %1640 = vmatprep.subr.mxu0 0.0
    %1641 = vmatpush1.msra.mxu0 0.0
    %1642 = vmatprep.subr.mxu0 0.0
    %1643 = vmatpush1.msra.mxu0 0.0
    %1644 = vmatprep.subr.mxu0 0.0
    %1645 = vmatpush1.msra.mxu0 0.0
    %1646 = vmatprep.subr.mxu0 0.0
    %1647 = vmatpush1.msra.mxu0 0.0
    %1648 = vmatprep.subr.mxu0 0.0
    %1649 = vmatpush1.msra.mxu0 0.0
    %1650 = vmatprep.subr.mxu0 0.0
    %1651 = vmatpush1.msra.mxu0 0.0
    %1652 = vmatprep.subr.mxu0 0.0
    %1653 = vmatpush1.msra.mxu0 0.0
    %1654 = vmatprep.subr.mxu0 0.0
    %1655 = vmatpush1.msra.mxu0 0.0
    %1656 = vmatprep.subr.mxu0 0.0
    %1657 = vmatpush1.msra.mxu0 0.0
    %1658 = vmatprep.subr.mxu0 0.0
    %1659 = vmatpush1.msra.mxu0 0.0
    %1660 = vmatprep.subr.mxu0 0.0
    %1661 = vmatpush1.msra.mxu0 0.0
    %1662 = vmatprep.subr.mxu0 0.0
    %1663 = vmatpush1.msra.mxu0 0.0
    %1664 = vmatprep.subr.mxu0 0.0
    %1665 = vmatpush1.msra.mxu0 0.0
    %1666 = vmatprep.subr.mxu0 0.0
    %1667 = vmatpush1.msra.mxu0 0.0
    %1668 = vmatprep.subr.mxu0 0.0
    %1669 = vmatpush1.msra.mxu0 0.0
    %1670 = vmatprep.subr.mxu0 0.0
    %1671 = vmatpush1.msra.mxu0 0.0
    %1672 = vmatprep.subr.mxu0 0.0
    %1673 = vmatpush1.msra.mxu0 0.0
    %1674 = vmatprep.subr.mxu0 0.0
    %1675 = vmatpush1.msra.mxu0 0.0
    %1676 = vmatprep.subr.mxu0 0.0
    %1677 = vmatpush1.msra.mxu0 0.0
    %1678 = vmatprep.subr.mxu0 0.0
    %1679 = vmatpush1.msra.mxu0 0.0
    %1680 = vmatprep.subr.mxu0 0.0
    %1681 = vmatpush1.msra.mxu0 0.0
    %1682 = vmatprep.subr.mxu0 0.0
    %1683 = vmatpush1.msra.mxu0 0.0
    %1684 = vmatprep.subr.mxu0 0.0
    %1685 = vmatpush1.msra.mxu0 0.0
    %1686 = vmatprep.subr.mxu0 0.0
    %1687 = vmatpush1.msra.mxu0 0.0
    %1688 = vmatprep.mubr.f32.mxu0 0.0
    %1689 = vmatmul.mubr.f32.gmra.mrb[0].mxu0 %v1622
    %v1690 = vpop.f32.mrb[0].mxu0
    %v1691 = vadd.f32 %v1619, %v1690
    %v1692 = vpop.f32.mrb[0].mxu0
    %1693 = vdwg.mxu0
    %vm1694 = vcmask 31744
    %1695 = vst.msk [vmem:[%s12] sm:$0xff] %vm1694, %v1691
    // Predicated region
    $region58: #{model_forward.1} parent=1 // pred_check
      _
    $region59: #{model_forward.1} parent=1 // pred_check_branch
      %1697 = sbr.rel (0) target = $region61
    $region60: #{model_forward.1} parent=1 // pred_region
      _
    $region61: #{model_forward.1} parent=1 // pred_fallthru
      _
    // Predicated region
    $region62: #{model_forward.1} parent=1 // pred_check
      _
    $region63: #{model_forward.1} parent=1 // pred_check_branch
      %1699 = sbr.rel (0) target = $region65
    $region64: #{model_forward.1} parent=1 // pred_region
      _
    $region65: #{model_forward.1} parent=1 // pred_fallthru
      _
    %1700 = vsyncpa [#allocation4], 1
    %1701 = vsyncpa [#allocation6], 1

</llo_original>
